<compile_context>
chip_gen: v6e
topology: v6e:2x2x1
jax: 0.10.0
libtpu: 0.0.40
codegen_flags: <defaults>
</compile_context>

<pallas_src>
import math
import numpy as np
import jax
import jax.numpy as jnp
from jax.experimental import pallas as pl
from jax.experimental.pallas import tpu as pltpu

RADIUS = 0.06            # module default
REG_CHANNEL = 9          # grasp_channel
ANCHOR_NUMBER = 4        # from _enumerate_templates()
CLS_ROWS = 2 * ANCHOR_NUMBER                    # 8
REG_ROWS = REG_CHANNEL * ANCHOR_NUMBER          # 36
HEAD_ROWS = CLS_ROWS + REG_ROWS                 # 44
MAX_LANE_TILE = 1024     # lane-tile target (512-2048; 1024 is v7x-VMEM safe)


def _enumerate_templates():
    """numpy port of the PyTorch template enumeration. Returns (4, 4)."""
    s3 = math.sqrt(3.0) / 3.0
    t_r = np.array([[s3, s3, s3], [s3, s3, -s3], [s3, -s3, -s3], [s3, -s3, s3]],
                   dtype=np.float32)
    t_theta = np.zeros((4, 1), dtype=np.float32)
    return np.concatenate([t_r, t_theta], axis=1)


def _pick_tile(dim, max_tile=MAX_LANE_TILE):
    """Largest multiple of 128 (<= max_tile) dividing `dim` (dim % 128 == 0)."""
    assert dim % 128 == 0
    best, t = 128, 128
    while t <= min(max_tile, dim):
        if dim % t == 0:
            best = t
        t += 128
    return best


# ---------------------------------------------------------------------------
# One-time parameter preparation (hoisted out of the forward trace).
# ---------------------------------------------------------------------------
def prepare_params(params):
    """Stack cls+reg head weights in field-major row order and fold the decode
    affine (radius / pi scaling, anchor direction & theta offsets) into them.

    Field-major rows: [c0(4), c1(4), cx(4), cy(4), cz(4), ox(4), oy(4), oz(4),
                       theta(4), s0(4), s1(4)]  -> (44, F)
    """
    wcls, bcls = params["wcls"], params["bcls"]     # (8, F), (8, 1): row = a*2+k
    wr, br = params["wr"], params["br"]             # (36, F), (36, 1): row = a*9+r

    w_fm = jnp.concatenate(
        [wcls[0::2], wcls[1::2]] + [wr[r::REG_CHANNEL] for r in range(REG_CHANNEL)],
        axis=0)                                     # (44, F)
    b_fm = jnp.concatenate(
        [bcls[0::2], bcls[1::2]] + [br[r::REG_CHANNEL] for r in range(REG_CHANNEL)],
        axis=0)                                     # (44, 1)

    tem = _enumerate_templates()                    # (4, 4): dirs + theta
    scale = np.ones((HEAD_ROWS, 1), np.float32)
    scale[8:20] = RADIUS                            # cx, cy, cz rows
    scale[32:36] = math.pi                          # theta rows
    offset = np.zeros((HEAD_ROWS, 1), np.float32)
    offset[20:24, 0] = tem[:, 0]                    # ox += anchor dir x
    offset[24:28, 0] = tem[:, 1]                    # oy += anchor dir y
    offset[28:32, 0] = tem[:, 2]                    # oz += anchor dir z
    offset[32:36, 0] = tem[:, 3]                    # theta += anchor theta (0)

    w_head = w_fm * jnp.asarray(scale)
    b_head = b_fm * jnp.asarray(scale) + jnp.asarray(offset)
    return {"w1": params["w1"], "b1": params["b1"],
            "w_head": w_head, "b_head": b_head}


# ---------------------------------------------------------------------------
# Fused kernel: backbone MLP + stacked heads + grasp decode.
# ---------------------------------------------------------------------------
def _fused_forward(x_cf, w1, b1, w_head, b_head, *, n_sel_tiles, tile_n,
                   feature_dtype):
    B, _, N_pad = x_cf.shape
    F = w1.shape[0]
    nt = N_pad // tile_n
    gate = n_sel_tiles < nt
    n_sel_pad = n_sel_tiles * tile_n

    def kernel(x_ref, w1_ref, b1_ref, wh_ref, bh_ref, feat_ref, grasp_ref):
        x6 = x_ref[...]                                                  # (6, T)
        # Backbone stand-in: per-point shared MLP (MXU), relu.
        h = jnp.dot(w1_ref[...], x6, preferred_element_type=jnp.float32)
        feat = jnp.maximum(h + b1_ref[...], 0.0)                         # (F, T)
        feat_ref[...] = feat.astype(feat_ref.dtype)

        def decode():
            # Stacked heads: cls+reg in one (44, F) matmul; the decode affine
            # is already folded into wh/bh, so rows 8..43 come out decoded
            # (except the xyz add and the orientation normalization).
            heads = jnp.dot(wh_ref[...], feat,
                            preferred_element_type=jnp.float32) + bh_ref[...]
            # Anchor keep mask: argmax(cls)==1  <=>  c1 > c0 (stable-sort tie
            # break toward class 0 in the PyTorch code).
            keep = heads[4:8, :] > heads[0:4, :]                         # (4, T)

            cx = heads[8:12, :] + x6[0:1, :]                             # centers
            cy = heads[12:16, :] + x6[1:2, :]
            cz = heads[16:20, :] + x6[2:3, :]
            ox = heads[20:24, :]                                         # orientation
            oy = heads[24:28, :]
            oz = heads[28:32, :]
            inv = jax.lax.rsqrt(ox * ox + oy * oy + oz * oz + 1e-12)     # EUP
            rest = heads[32:44, :]                                       # theta, s0, s1

            neg1 = jnp.float32(-1.0)
            vals = jnp.concatenate(
                [jnp.where(keep, cx, neg1),
                 jnp.where(keep, cy, neg1),
                 jnp.where(keep, cz, neg1),
                 jnp.where(keep, ox * inv, neg1),
                 jnp.where(keep, oy * inv, neg1),
                 jnp.where(keep, oz * inv, neg1),
                 jnp.where(keep, rest[0:4, :], neg1),
                 jnp.where(keep, rest[4:8, :], neg1),
                 jnp.where(keep, rest[8:12, :], neg1)],
                axis=0)                                                  # (36, T)
            grasp_ref[...] = vals                                        # one store

        if gate:
            pl.when(pl.program_id(1) < n_sel_tiles)(decode)
        else:
            decode()

    if gate:
        # Clamp so skipped steps revisit the last valid block (never written
        # under pl.when, so its contents survive to the final writeback).
        grasp_idx = lambda b, j: (b, 0, jnp.minimum(j, n_sel_tiles - 1))
    else:
        grasp_idx = lambda b, j: (b, 0, j)

    return pl.pallas_call(
        kernel,
        grid=(B, nt),
        in_specs=[
            pl.BlockSpec((None, 6, tile_n), lambda b, j: (b, 0, j)),
            pl.BlockSpec(w1.shape, lambda b, j: (0, 0)),
            pl.BlockSpec(b1.shape, lambda b, j: (0, 0)),
            pl.BlockSpec(w_head.shape, lambda b, j: (0, 0)),
            pl.BlockSpec(b_head.shape, lambda b, j: (0, 0)),
        ],
        out_specs=(
            pl.BlockSpec((None, F, tile_n), lambda b, j: (b, 0, j)),
            pl.BlockSpec((None, REG_ROWS, tile_n), grasp_idx),
        ),
        out_shape=(
            jax.ShapeDtypeStruct((B, F, N_pad), feature_dtype),
            jax.ShapeDtypeStruct((B, REG_ROWS, n_sel_pad), jnp.float32),
        ),
        compiler_params=pltpu.CompilerParams(
            dimension_semantics=("parallel", "arbitrary")),
    )(x_cf, w1, b1, w_head, b_head)


# ---------------------------------------------------------------------------
# Forward wrapper mirroring GraspProposalNetwork.forward (inference branch).
# ---------------------------------------------------------------------------
def grasp_proposal_forward(pc, prep, n_select, *, max_lane_tile=MAX_LANE_TILE,
                           feature_dtype=jnp.float32):
    """pc: [B, N, >=6] float32. Returns (all_feature, group_feature, pre_grasp,
    loss, loss_tuple, gt) matching the PyTorch forward's return structure."""
    B, N, _ = pc.shape
    if n_select > N:
        raise ValueError("n_select must be <= N")
    F = prep["w1"].shape[0]

    # Pad N to a lane multiple; keep tiles 128-aligned (no full-dim fallback).
    N_pad = pl.cdiv(N, 128) * 128
    pc6 = pc[:, :, :6]
    if N_pad != N:
        pc6 = jnp.pad(pc6, ((0, 0), (0, N_pad - N), (0, 0)))
    x_cf = jnp.transpose(pc6, (0, 2, 1))                                # (B, 6, N_pad)

    tile_n = _pick_tile(N_pad, max_lane_tile)
    nt = N_pad // tile_n
    n_sel_tiles = min(max(1, pl.cdiv(n_select, tile_n)), nt)

    all_feature, grasp = _fused_forward(
        x_cf, prep["w1"], prep["b1"], prep["w_head"], prep["b_head"],
        n_sel_tiles=n_sel_tiles, tile_n=tile_n, feature_dtype=feature_dtype)

    if N_pad != N:
        all_feature = all_feature[:, :, :N]                             # (B, F, N)
    if grasp.shape[-1] != n_select:
        grasp = grasp[:, :, :n_select]                                  # (B, 36, n_sel)

    # grasp is field-major (row = field*4 + anchor); reorder to the PyTorch
    # [B, n_sel*anchor, 9] layout (point-major, anchor-minor, fields last).
    pre_grasp = (grasp.reshape(B, REG_CHANNEL, ANCHOR_NUMBER, n_select)
                      .transpose(0, 3, 2, 1)
                      .reshape(B, n_select * ANCHOR_NUMBER, REG_CHANNEL))

    # group_feature: [B*n_sel*anchor, F] (point-major, anchor-minor).
    gf = jnp.transpose(all_feature[:, :, :n_select], (0, 2, 1))          # (B, n_sel, F)
    group_feature = jnp.broadcast_to(
        gf[:, :, None, :], (B, n_select, ANCHOR_NUMBER, F)).reshape(-1, F)

    # Losses with pc_conf=None / data_path=None: everything is zero.
    zeros1 = jnp.zeros((1,), jnp.float32)
    loss_conf = zeros1
    cls_loss, reg_loss = zeros1, zeros1
    loss_grasp = cls_loss / 10.0 + reg_loss
    acc, recall = zeros1, zeros1
    loss_tuple = [zeros1] * 8 + [acc, recall, cls_loss, reg_loss]
    loss = loss_conf + loss_grasp
    loss_tuple.append(loss_conf)
    gt = None
    return all_feature, group_feature, pre_grasp, loss, loss_tuple, gt


def init_params(key, feat_dim=32):
    ks = jax.random.split(key, 6)
    scale = 0.1
    return {
        "w1":   scale * jax.random.normal(ks[0], (feat_dim, 6), jnp.float32),
        "b1":   scale * jax.random.normal(ks[1], (feat_dim, 1), jnp.float32),
        "wcls": scale * jax.random.normal(ks[2], (CLS_ROWS, feat_dim), jnp.float32),
        "bcls": scale * jax.random.normal(ks[3], (CLS_ROWS, 1), jnp.float32),
        "wr":   scale * jax.random.normal(ks[4], (REG_ROWS, feat_dim), jnp.float32),
        "br":   scale * jax.random.normal(ks[5], (REG_ROWS, 1), jnp.float32),
    }


if __name__ == "__main__":
    key = jax.random.PRNGKey(0)
    k_pc, k_params = jax.random.split(key)

    B, N, n_select, feat_dim = 2, 2048, 200, 32
    pc = jax.random.normal(k_pc, (B, N, 6), jnp.float32)
    params = init_params(k_params, feat_dim)
    prep = prepare_params(params)           # hoisted: head stacking + affine fold

    fwd = jax.jit(grasp_proposal_forward, static_argnames=("n_select",))
    all_feature, group_feature, pre_grasp, loss, loss_tuple, gt = \
        fwd(pc, prep, n_select=n_select)

    jax.block_until_ready((all_feature, group_feature, pre_grasp, loss, loss_tuple))

    assert all_feature.shape == (B, feat_dim, N)
    assert group_feature.shape == (B * n_select * ANCHOR_NUMBER, feat_dim)
    assert pre_grasp.shape == (B, n_select * ANCHOR_NUMBER, REG_CHANNEL)
    assert loss.shape == (1,)
    assert len(loss_tuple) == 13
    assert gt is None
    print("KERNEL_OK")
</pallas_src>

<mosaic_0001>
module attributes {stable_mosaic.version = 11 : i64} {
  func.func @kernel(%arg0: i32, %arg1: i32, %arg2: memref<1x6x1024xf32, #tpu.memory_space<vmem>>, %arg3: memref<32x6xf32, #tpu.memory_space<vmem>>, %arg4: memref<32x1xf32, #tpu.memory_space<vmem>>, %arg5: memref<44x32xf32, #tpu.memory_space<vmem>>, %arg6: memref<44x1xf32, #tpu.memory_space<vmem>>, %arg7: memref<1x32x1024xf32, #tpu.memory_space<vmem>>, %arg8: memref<1x36x1024xf32, #tpu.memory_space<vmem>>) attributes {dimension_semantics = [#tpu.dimension_semantics<parallel>, #tpu.dimension_semantics<arbitrary>], iteration_bounds = array<i64: 2, 2>, scalar_prefetch = 0 : i64, scratch_operands = 0 : i64, tpu.core_type = #tpu.core_type<tc>, window_params = [{transform_indices = @transform_0, window_bounds = array<i64: 1, 6, 1024>}, {pipeline_mode = #tpu.pipeline_mode<synchronous>, transform_indices = @transform_1, window_bounds = array<i64: 32, 6>}, {pipeline_mode = #tpu.pipeline_mode<synchronous>, transform_indices = @transform_2, window_bounds = array<i64: 32, 1>}, {pipeline_mode = #tpu.pipeline_mode<synchronous>, transform_indices = @transform_3, window_bounds = array<i64: 44, 32>}, {pipeline_mode = #tpu.pipeline_mode<synchronous>, transform_indices = @transform_4, window_bounds = array<i64: 44, 1>}, {transform_indices = @transform_5, window_bounds = array<i64: 1, 32, 1024>}, {transform_indices = @transform_6, window_bounds = array<i64: 1, 36, 1024>}]} {
    %c0 = arith.constant 0 : index
    %c0_0 = arith.constant 0 : index
    %c0_1 = arith.constant 0 : index
    %0 = vector.load %arg2[%c0, %c0_0, %c0_1] : memref<1x6x1024xf32, #tpu.memory_space<vmem>>, vector<1x6x1024xf32>
    %1 = vector.shape_cast %0 : vector<1x6x1024xf32> to vector<6x1024xf32>
    %c0_2 = arith.constant 0 : index
    %c0_3 = arith.constant 0 : index
    %2 = vector.load %arg3[%c0_2, %c0_3] : memref<32x6xf32, #tpu.memory_space<vmem>>, vector<32x6xf32>
    %cst = arith.constant dense<0.000000e+00> : vector<32x1024xf32>
    %3 = tpu.matmul %2, %1, %cst {dimension_numbers = #tpu.dot_dimension_numbers<[1], [0], [0], [1], [0, 0, 1, 1], [], []>} : vector<32x6xf32>, vector<6x1024xf32>, vector<32x1024xf32> -> vector<32x1024xf32>
    %c0_4 = arith.constant 0 : index
    %c0_5 = arith.constant 0 : index
    %4 = vector.load %arg4[%c0_4, %c0_5] : memref<32x1xf32, #tpu.memory_space<vmem>>, vector<32x1xf32>
    %5 = vector.broadcast %4 : vector<32x1xf32> to vector<32x1024xf32>
    %6 = arith.addf %3, %5 : vector<32x1024xf32>
    %cst_6 = arith.constant 0.000000e+00 : f32
    %7 = vector.broadcast %cst_6 : f32 to vector<32x1024xf32>
    %8 = arith.maximumf %6, %7 : vector<32x1024xf32>
    %c0_7 = arith.constant 0 : index
    %c0_8 = arith.constant 0 : index
    %c0_9 = arith.constant 0 : index
    %9 = vector.load %arg7[%c0_7, %c0_8, %c0_9] : memref<1x32x1024xf32, #tpu.memory_space<vmem>>, vector<1x32x1024xf32>
    %10 = vector.shape_cast %9 : vector<1x32x1024xf32> to vector<32x1024xf32>
    %11 = vector.shape_cast %8 : vector<32x1024xf32> to vector<1x32x1024xf32>
    tpu.vector_store %arg7[%c0_7, %c0_8, %c0_9], %11 {strides = array<i32>} : memref<1x32x1024xf32, #tpu.memory_space<vmem>>, vector<1x32x1024xf32>,
    %c1_i32 = arith.constant 1 : i32
    %12 = arith.cmpi slt, %arg1, %c1_i32 : i32
    %13 = arith.extui %12 : i1 to i32
    %c0_i32 = arith.constant 0 : i32
    %14 = arith.cmpi ne, %13, %c0_i32 : i32
    scf.if %14 {
      %c0_10 = arith.constant 0 : index
      %c0_11 = arith.constant 0 : index
      %15 = vector.load %arg5[%c0_10, %c0_11] : memref<44x32xf32, #tpu.memory_space<vmem>>, vector<44x32xf32>
      %cst_12 = arith.constant dense<0.000000e+00> : vector<44x1024xf32>
      %16 = tpu.matmul %15, %8, %cst_12 {dimension_numbers = #tpu.dot_dimension_numbers<[1], [0], [0], [1], [0, 0, 1, 1], [], []>} : vector<44x32xf32>, vector<32x1024xf32>, vector<44x1024xf32> -> vector<44x1024xf32>
      %c0_13 = arith.constant 0 : index
      %c0_14 = arith.constant 0 : index
      %17 = vector.load %arg6[%c0_13, %c0_14] : memref<44x1xf32, #tpu.memory_space<vmem>>, vector<44x1xf32>
      %18 = vector.broadcast %17 : vector<44x1xf32> to vector<44x1024xf32>
      %19 = arith.addf %16, %18 : vector<44x1024xf32>
      %20 = vector.extract_strided_slice %19 {offsets = [4, 0], sizes = [4, 1024], strides = [1, 1]} : vector<44x1024xf32> to vector<4x1024xf32>
      %21 = vector.extract_strided_slice %19 {offsets = [0, 0], sizes = [4, 1024], strides = [1, 1]} : vector<44x1024xf32> to vector<4x1024xf32>
      %22 = arith.cmpf ogt, %20, %21 : vector<4x1024xf32>
      %23 = vector.extract_strided_slice %19 {offsets = [8, 0], sizes = [4, 1024], strides = [1, 1]} : vector<44x1024xf32> to vector<4x1024xf32>
      %24 = vector.extract_strided_slice %1 {offsets = [0, 0], sizes = [1, 1024], strides = [1, 1]} : vector<6x1024xf32> to vector<1x1024xf32>
      %25 = vector.broadcast %24 : vector<1x1024xf32> to vector<4x1024xf32>
      %26 = arith.addf %23, %25 : vector<4x1024xf32>
      %27 = vector.extract_strided_slice %19 {offsets = [12, 0], sizes = [4, 1024], strides = [1, 1]} : vector<44x1024xf32> to vector<4x1024xf32>
      %28 = vector.extract_strided_slice %1 {offsets = [1, 0], sizes = [1, 1024], strides = [1, 1]} : vector<6x1024xf32> to vector<1x1024xf32>
      %29 = vector.broadcast %28 : vector<1x1024xf32> to vector<4x1024xf32>
      %30 = arith.addf %27, %29 : vector<4x1024xf32>
      %31 = vector.extract_strided_slice %19 {offsets = [16, 0], sizes = [4, 1024], strides = [1, 1]} : vector<44x1024xf32> to vector<4x1024xf32>
      %32 = vector.extract_strided_slice %1 {offsets = [2, 0], sizes = [1, 1024], strides = [1, 1]} : vector<6x1024xf32> to vector<1x1024xf32>
      %33 = vector.broadcast %32 : vector<1x1024xf32> to vector<4x1024xf32>
      %34 = arith.addf %31, %33 : vector<4x1024xf32>
      %35 = vector.extract_strided_slice %19 {offsets = [20, 0], sizes = [4, 1024], strides = [1, 1]} : vector<44x1024xf32> to vector<4x1024xf32>
      %36 = vector.extract_strided_slice %19 {offsets = [24, 0], sizes = [4, 1024], strides = [1, 1]} : vector<44x1024xf32> to vector<4x1024xf32>
      %37 = vector.extract_strided_slice %19 {offsets = [28, 0], sizes = [4, 1024], strides = [1, 1]} : vector<44x1024xf32> to vector<4x1024xf32>
      %38 = arith.mulf %35, %35 : vector<4x1024xf32>
      %39 = arith.mulf %36, %36 : vector<4x1024xf32>
      %40 = arith.addf %38, %39 : vector<4x1024xf32>
      %41 = arith.mulf %37, %37 : vector<4x1024xf32>
      %42 = arith.addf %40, %41 : vector<4x1024xf32>
      %cst_15 = arith.constant 9.99999996E-13 : f32
      %43 = vector.broadcast %cst_15 : f32 to vector<4x1024xf32>
      %44 = arith.addf %42, %43 : vector<4x1024xf32>
      %45 = math.rsqrt %44 : vector<4x1024xf32>
      %46 = vector.extract_strided_slice %19 {offsets = [32, 0], sizes = [12, 1024], strides = [1, 1]} : vector<44x1024xf32> to vector<12x1024xf32>
      %cst_16 = arith.constant -1.000000e+00 : f32
      %47 = vector.broadcast %cst_16 : f32 to vector<4x1024xf32>
      %48 = arith.select %22, %26, %47 : vector<4x1024xi1>, vector<4x1024xf32>
      %cst_17 = arith.constant -1.000000e+00 : f32
      %49 = vector.broadcast %cst_17 : f32 to vector<4x1024xf32>
      %50 = arith.select %22, %30, %49 : vector<4x1024xi1>, vector<4x1024xf32>
      %cst_18 = arith.constant -1.000000e+00 : f32
      %51 = vector.broadcast %cst_18 : f32 to vector<4x1024xf32>
      %52 = arith.select %22, %34, %51 : vector<4x1024xi1>, vector<4x1024xf32>
      %53 = arith.mulf %35, %45 : vector<4x1024xf32>
      %cst_19 = arith.constant -1.000000e+00 : f32
      %54 = vector.broadcast %cst_19 : f32 to vector<4x1024xf32>
      %55 = arith.select %22, %53, %54 : vector<4x1024xi1>, vector<4x1024xf32>
      %56 = arith.mulf %36, %45 : vector<4x1024xf32>
      %cst_20 = arith.constant -1.000000e+00 : f32
      %57 = vector.broadcast %cst_20 : f32 to vector<4x1024xf32>
      %58 = arith.select %22, %56, %57 : vector<4x1024xi1>, vector<4x1024xf32>
      %59 = arith.mulf %37, %45 : vector<4x1024xf32>
      %cst_21 = arith.constant -1.000000e+00 : f32
      %60 = vector.broadcast %cst_21 : f32 to vector<4x1024xf32>
      %61 = arith.select %22, %59, %60 : vector<4x1024xi1>, vector<4x1024xf32>
      %62 = vector.extract_strided_slice %46 {offsets = [0, 0], sizes = [4, 1024], strides = [1, 1]} : vector<12x1024xf32> to vector<4x1024xf32>
      %cst_22 = arith.constant -1.000000e+00 : f32
      %63 = vector.broadcast %cst_22 : f32 to vector<4x1024xf32>
      %64 = arith.select %22, %62, %63 : vector<4x1024xi1>, vector<4x1024xf32>
      %65 = vector.extract_strided_slice %46 {offsets = [4, 0], sizes = [4, 1024], strides = [1, 1]} : vector<12x1024xf32> to vector<4x1024xf32>
      %cst_23 = arith.constant -1.000000e+00 : f32
      %66 = vector.broadcast %cst_23 : f32 to vector<4x1024xf32>
      %67 = arith.select %22, %65, %66 : vector<4x1024xi1>, vector<4x1024xf32>
      %68 = vector.extract_strided_slice %46 {offsets = [8, 0], sizes = [4, 1024], strides = [1, 1]} : vector<12x1024xf32> to vector<4x1024xf32>
      %cst_24 = arith.constant -1.000000e+00 : f32
      %69 = vector.broadcast %cst_24 : f32 to vector<4x1024xf32>
      %70 = arith.select %22, %68, %69 : vector<4x1024xi1>, vector<4x1024xf32>
      %71 = tpu.concatenate %48, %50, %52, %55, %58, %61, %64, %67, %70 in 0 : vector<4x1024xf32>, vector<4x1024xf32>, vector<4x1024xf32>, vector<4x1024xf32>, vector<4x1024xf32>, vector<4x1024xf32>, vector<4x1024xf32>, vector<4x1024xf32>, vector<4x1024xf32> -> vector<36x1024xf32>
      %c0_25 = arith.constant 0 : index
      %c0_26 = arith.constant 0 : index
      %c0_27 = arith.constant 0 : index
      %72 = vector.load %arg8[%c0_25, %c0_26, %c0_27] : memref<1x36x1024xf32, #tpu.memory_space<vmem>>, vector<1x36x1024xf32>
      %73 = vector.shape_cast %72 : vector<1x36x1024xf32> to vector<36x1024xf32>
      %74 = vector.shape_cast %71 : vector<36x1024xf32> to vector<1x36x1024xf32>
      tpu.vector_store %arg8[%c0_25, %c0_26, %c0_27], %74 {strides = array<i32>} : memref<1x36x1024xf32, #tpu.memory_space<vmem>>, vector<1x36x1024xf32>,
    } else {
    }
    return
  }
  func.func @transform_0(%arg0: i32, %arg1: i32) -> (i32, i32, i32) {
    %c0_i32 = arith.constant 0 : i32
    %c0_i32_0 = arith.constant 0 : i32
    return %arg0, %c0_i32, %arg1 : i32, i32, i32
  }
  func.func @transform_1(%arg0: i32, %arg1: i32) -> (i32, i32) {
    %c0_i32 = arith.constant 0 : i32
    %c0_i32_0 = arith.constant 0 : i32
    %c0_i32_1 = arith.constant 0 : i32
    return %c0_i32, %c0_i32_0 : i32, i32
  }
  func.func @transform_2(%arg0: i32, %arg1: i32) -> (i32, i32) {
    %c0_i32 = arith.constant 0 : i32
    %c0_i32_0 = arith.constant 0 : i32
    %c0_i32_1 = arith.constant 0 : i32
    return %c0_i32, %c0_i32_0 : i32, i32
  }
  func.func @transform_3(%arg0: i32, %arg1: i32) -> (i32, i32) {
    %c0_i32 = arith.constant 0 : i32
    %c0_i32_0 = arith.constant 0 : i32
    %c0_i32_1 = arith.constant 0 : i32
    return %c0_i32, %c0_i32_0 : i32, i32
  }
  func.func @transform_4(%arg0: i32, %arg1: i32) -> (i32, i32) {
    %c0_i32 = arith.constant 0 : i32
    %c0_i32_0 = arith.constant 0 : i32
    %c0_i32_1 = arith.constant 0 : i32
    return %c0_i32, %c0_i32_0 : i32, i32
  }
  func.func @transform_5(%arg0: i32, %arg1: i32) -> (i32, i32, i32) {
    %c0_i32 = arith.constant 0 : i32
    %c0_i32_0 = arith.constant 0 : i32
    return %arg0, %c0_i32, %arg1 : i32, i32, i32
  }
  func.func @transform_6(%arg0: i32, %arg1: i32) -> (i32, i32, i32) {
    %c0_i32 = arith.constant 0 : i32
    %0 = arith.minsi %arg1, %c0_i32 : i32
    %c0_i32_0 = arith.constant 0 : i32
    %c0_i32_1 = arith.constant 0 : i32
    return %arg0, %c0_i32_0, %0 : i32, i32, i32
  }
}

</mosaic_0001>

<llo_original>
// kernel: grasp_proposal_forward.1
$region0: #{grasp_proposal_forward.1}
  #allocation0 [shape = 'u32[]', space=smem, size = 0x4, offset = 0x4, fixed_abs, tag = 'smem constant byte address 0x4 - core index']
  #allocation1 [shape = 'u32[144,128]{1,0:T(1,128)}', space=vmem, size = 0x12000, scoped, tag = 'internal scratch']
  %s0 = inlined_call_operand.vmem [shape: f32[2,6,2048], index: 0, kind: input, shape index: {}]
  %s1 = inlined_call_operand.vmem [shape: f32[32,6], index: 1, kind: input, shape index: {}]
  %s2 = inlined_call_operand.vmem [shape: f32[32,1], index: 2, kind: input, shape index: {}]
  %s3 = inlined_call_operand.vmem [shape: f32[44,32], index: 3, kind: input, shape index: {}]
  %s4 = inlined_call_operand.vmem [shape: f32[44,1], index: 4, kind: input, shape index: {}]
  %s5 = inlined_call_operand.vmem [shape: f32[2,32,2048], index: 5, kind: output, shape index: {0}]
  %s6 = inlined_call_operand.vmem [shape: f32[2,36,1024], index: 6, kind: output, shape index: {1}]
  %7 = xla_tuple %s5, %s6
  %s8 = sld [smem:[#allocation0]]
  $region84: #{grasp_proposal_forward.1} parent=0
    _
  %s10 = ssub.s32 1, %s8
  %s11 = scalar_select 0, %s10, %s8
  $region1: #{grasp_proposal_forward.1} parent=0
    #allocation2 [shape = 'u8[262144]{0}', space=vmem, size = 0x40000, scoped, tag = 'output window, operand 0']
    loop: start=0, step=1, limit=6
    $region2: #{grasp_proposal_forward.1} parent=1 // loop_pre_header
      _
    $region3: #{grasp_proposal_forward.1} parent=1 // loop_header
      %s13 = sphi 0, %s17
      %p14 = scmp.ge.s32.totalorder %s13, 6
      %s20 = sphi 0, %s32
      %s21 = sphi 0, %s28
      %s22 = sphi 0, %s20
      %s23 = sphi 0, %s21
      %s24 = sphi 0, %s22
      %s25 = sphi 0, %s23
      %s37 = sphi 0, %s39
      %s40 = sphi 0, %s37
      %s41 = sphi 0, %s40
      %s57 = sphi 0, %s41
      %s61 = sphi 0, %s61
      %s63 = sphi 0, %s61
      %s64 = sphi 0, %s63
      %s78 = sphi 0, %s64
      %s82 = sphi 0, %s82
      %s84 = sphi 0, %s82
      %s85 = sphi 0, %s84
      %s99 = sphi 0, %s85
      %s103 = sphi 0, %s103
      %s105 = sphi 0, %s103
      %s106 = sphi 0, %s105
      %s120 = sphi 0, %s106
      %s124 = sphi 0, %s124
      %s126 = sphi 0, %s124
      %s127 = sphi 0, %s126
      %s141 = sphi 0, %s127
      %s149 = sphi 0, %s151
      %s152 = sphi 0, %s149
      %s153 = sphi 0, %s152
      %s169 = sphi 0, %s153
      %s181 = sphi 0, %s183
      %s184 = sphi 0, %s181
      %s185 = sphi 0, %s184
      %s201 = sphi 0, %s185
    $region4: #{grasp_proposal_forward.1} parent=1 // loop_header_branch
      %16 = sbr.rel (%p14) target = $region8
    $region5: #{grasp_proposal_forward.1} parent=1 // loop_body
      %s18 = ssub.s32 %s13, 1
      %s19 = ssub.s32 %s13, 2
      %s26 = sadd.s32 1, %s21
      %p27 = scmp.ge.s32.totalorder %s26, 2
      %s28 = scalar_select %p27, 0, %s26
      %s29 = sadd.s32 1, %s20
      %s30 = scalar_select %p27, %s29, %s20
      %p31 = scmp.ge.s32.totalorder %s30, 2
      %s32 = scalar_select %p31, 0, %s30
      %s33 = ssub.s32 %s20, %s32
      %s34 = ssub.s32 %s21, %s28
      %s35 = sor.u32 %s33, %s34
      %p36 = scmp.eq.s32.totalorder %s35, 0
      %s38 = sadd.s32 %s37, 1
      %s39 = scalar_select %p36, %s37, %s38
      %p42 = pneg %p36
      %p43 = scmp.eq.s32.totalorder %s13, 3
      %p44 = por %p42, %p43
      %p45 = scmp.ne.s32.totalorder %s37, %s40
      %p46 = scmp.eq.s32.totalorder %s13, 0
      %p47 = por %p45, %p46
      %p48 = scmp.ne.s32.totalorder %s37, %s40
      %p49 = scmp.eq.s32.totalorder %s18, 3
      %p50 = por %p48, %p49
      %p51 = scmp.ne.s32.totalorder %s40, %s41
      %p52 = scmp.eq.s32.totalorder %s18, 0
      %p53 = por %p51, %p52
      %p54 = scmp.ne.s32.totalorder %s40, %s41
      %p55 = scmp.eq.s32.totalorder %s19, 3
      %p56 = por %p54, %p55
      %p58 = scmp.ne.s32.totalorder %s41, %s57
      %p59 = scmp.eq.s32.totalorder %s19, 0
      %p60 = por %p58, %p59
      %s62 = sadd.s32 %s61, 1
      %p65 = scmp.eq.s32.totalorder %s13, 3
      %p66 = scmp.ne.s32.totalorder %s61, %s63
      %p67 = scmp.eq.s32.totalorder %s13, 0
      %p68 = por %p66, %p67
      %p69 = scmp.ne.s32.totalorder %s61, %s63
      %p70 = scmp.eq.s32.totalorder %s18, 3
      %p71 = por %p69, %p70
      %p72 = scmp.ne.s32.totalorder %s63, %s64
      %p73 = scmp.eq.s32.totalorder %s18, 0
      %p74 = por %p72, %p73
      %p75 = scmp.ne.s32.totalorder %s63, %s64
      %p76 = scmp.eq.s32.totalorder %s19, 3
      %p77 = por %p75, %p76
      %p79 = scmp.ne.s32.totalorder %s64, %s78
      %p80 = scmp.eq.s32.totalorder %s19, 0
      %p81 = por %p79, %p80
      %s83 = sadd.s32 %s82, 1
      %p86 = scmp.eq.s32.totalorder %s13, 3
      %p87 = scmp.ne.s32.totalorder %s82, %s84
      %p88 = scmp.eq.s32.totalorder %s13, 0
      %p89 = por %p87, %p88
      %p90 = scmp.ne.s32.totalorder %s82, %s84
      %p91 = scmp.eq.s32.totalorder %s18, 3
      %p92 = por %p90, %p91
      %p93 = scmp.ne.s32.totalorder %s84, %s85
      %p94 = scmp.eq.s32.totalorder %s18, 0
      %p95 = por %p93, %p94
      %p96 = scmp.ne.s32.totalorder %s84, %s85
      %p97 = scmp.eq.s32.totalorder %s19, 3
      %p98 = por %p96, %p97
      %p100 = scmp.ne.s32.totalorder %s85, %s99
      %p101 = scmp.eq.s32.totalorder %s19, 0
      %p102 = por %p100, %p101
      %s104 = sadd.s32 %s103, 1
      %p107 = scmp.eq.s32.totalorder %s13, 3
      %p108 = scmp.ne.s32.totalorder %s103, %s105
      %p109 = scmp.eq.s32.totalorder %s13, 0
      %p110 = por %p108, %p109
      %p111 = scmp.ne.s32.totalorder %s103, %s105
      %p112 = scmp.eq.s32.totalorder %s18, 3
      %p113 = por %p111, %p112
      %p114 = scmp.ne.s32.totalorder %s105, %s106
      %p115 = scmp.eq.s32.totalorder %s18, 0
      %p116 = por %p114, %p115
      %p117 = scmp.ne.s32.totalorder %s105, %s106
      %p118 = scmp.eq.s32.totalorder %s19, 3
      %p119 = por %p117, %p118
      %p121 = scmp.ne.s32.totalorder %s106, %s120
      %p122 = scmp.eq.s32.totalorder %s19, 0
      %p123 = por %p121, %p122
      %s125 = sadd.s32 %s124, 1
      %p128 = scmp.eq.s32.totalorder %s13, 3
      %p129 = scmp.ne.s32.totalorder %s124, %s126
      %p130 = scmp.eq.s32.totalorder %s13, 0
      %p131 = por %p129, %p130
      %p132 = scmp.ne.s32.totalorder %s124, %s126
      %p133 = scmp.eq.s32.totalorder %s18, 3
      %p134 = por %p132, %p133
      %p135 = scmp.ne.s32.totalorder %s126, %s127
      %p136 = scmp.eq.s32.totalorder %s18, 0
      %p137 = por %p135, %p136
      %p138 = scmp.ne.s32.totalorder %s126, %s127
      %p139 = scmp.eq.s32.totalorder %s19, 3
      %p140 = por %p138, %p139
      %p142 = scmp.ne.s32.totalorder %s127, %s141
      %p143 = scmp.eq.s32.totalorder %s19, 0
      %p144 = por %p142, %p143
      %s145 = ssub.s32 %s20, %s32
      %s146 = ssub.s32 %s21, %s28
      %s147 = sor.u32 %s145, %s146
      %p148 = scmp.eq.s32.totalorder %s147, 0
      %s150 = sadd.s32 %s149, 1
      %s151 = scalar_select %p148, %s149, %s150
      %p154 = pneg %p148
      %p155 = scmp.eq.s32.totalorder %s13, 3
      %p156 = por %p154, %p155
      %p157 = scmp.ne.s32.totalorder %s149, %s152
      %p158 = scmp.eq.s32.totalorder %s13, 0
      %p159 = por %p157, %p158
      %p160 = scmp.ne.s32.totalorder %s149, %s152
      %p161 = scmp.eq.s32.totalorder %s18, 3
      %p162 = por %p160, %p161
      %p163 = scmp.ne.s32.totalorder %s152, %s153
      %p164 = scmp.eq.s32.totalorder %s18, 0
      %p165 = por %p163, %p164
      %p166 = scmp.ne.s32.totalorder %s152, %s153
      %p167 = scmp.eq.s32.totalorder %s19, 3
      %p168 = por %p166, %p167
      %p170 = scmp.ne.s32.totalorder %s153, %s169
      %p171 = scmp.eq.s32.totalorder %s19, 0
      %p172 = por %p170, %p171
      %p173 = scmp.lt.s32.totalorder %s21, 0
      %s174 = scalar_select %p173, %s21, 0
      %p175 = scmp.lt.s32.totalorder %s28, 0
      %s176 = scalar_select %p175, %s28, 0
      %s177 = ssub.s32 %s20, %s32
      %s178 = ssub.s32 %s174, %s176
      %s179 = sor.u32 %s177, %s178
      %p180 = scmp.eq.s32.totalorder %s179, 0
      %s182 = sadd.s32 %s181, 1
      %s183 = scalar_select %p180, %s181, %s182
      %p186 = pneg %p180
      %p187 = scmp.eq.s32.totalorder %s13, 3
      %p188 = por %p186, %p187
      %p189 = scmp.ne.s32.totalorder %s181, %s184
      %p190 = scmp.eq.s32.totalorder %s13, 0
      %p191 = por %p189, %p190
      %p192 = scmp.ne.s32.totalorder %s181, %s184
      %p193 = scmp.eq.s32.totalorder %s18, 3
      %p194 = por %p192, %p193
      %p195 = scmp.ne.s32.totalorder %s184, %s185
      %p196 = scmp.eq.s32.totalorder %s18, 0
      %p197 = por %p195, %p196
      %p198 = scmp.ne.s32.totalorder %s184, %s185
      %p199 = scmp.eq.s32.totalorder %s19, 3
      %p200 = por %p198, %p199
      %p202 = scmp.ne.s32.totalorder %s185, %s201
      %p203 = scmp.eq.s32.totalorder %s19, 0
      %p204 = por %p202, %p203
      %p205 = scmp.le.s32.totalorder 1, %s13
      %p206 = scmp.lt.s32.totalorder %s13, 5
      %p207 = pnand %p205, %p206
      %p208 = pneg %p207
      // Predicated region
      $region9: #{grasp_proposal_forward.1} parent=5 // pred_check
        _
      $region10: #{grasp_proposal_forward.1} parent=5 // pred_check_branch
        %210 = sbr.rel (%p207) target = $region12
      $region11: #{grasp_proposal_forward.1} parent=5 // pred_region
        %s211 = ssub.s32 %s13, 1
        // Predicated region
        $region13: #{grasp_proposal_forward.1} parent=11 // pred_check
          %p212 = pneg %p74
        $region14: #{grasp_proposal_forward.1} parent=11 // pred_check_branch
          %214 = sbr.rel (%p212) target = $region16
        $region15: #{grasp_proposal_forward.1} parent=11 // pred_region
          _
        $region16: #{grasp_proposal_forward.1} parent=11 // pred_fallthru
          _
        // Predicated region
        $region17: #{grasp_proposal_forward.1} parent=11 // pred_check
          %p215 = pneg %p95
        $region18: #{grasp_proposal_forward.1} parent=11 // pred_check_branch
          %217 = sbr.rel (%p215) target = $region20
        $region19: #{grasp_proposal_forward.1} parent=11 // pred_region
          _
        $region20: #{grasp_proposal_forward.1} parent=11 // pred_fallthru
          _
        // Predicated region
        $region21: #{grasp_proposal_forward.1} parent=11 // pred_check
          %p218 = pneg %p116
        $region22: #{grasp_proposal_forward.1} parent=11 // pred_check_branch
          %220 = sbr.rel (%p218) target = $region24
        $region23: #{grasp_proposal_forward.1} parent=11 // pred_region
          _
        $region24: #{grasp_proposal_forward.1} parent=11 // pred_fallthru
          _
        // Predicated region
        $region25: #{grasp_proposal_forward.1} parent=11 // pred_check
          %p221 = pneg %p137
        $region26: #{grasp_proposal_forward.1} parent=11 // pred_check_branch
          %223 = sbr.rel (%p221) target = $region28
        $region27: #{grasp_proposal_forward.1} parent=11 // pred_region
          _
        $region28: #{grasp_proposal_forward.1} parent=11 // pred_fallthru
          _
      $region12: #{grasp_proposal_forward.1} parent=5 // pred_fallthru
        _
      %p224 = scmp.lt.s32.totalorder %s13, 4
      // Predicated region
      $region29: #{grasp_proposal_forward.1} parent=5 // pred_check
        %p225 = pneg %p224
      $region30: #{grasp_proposal_forward.1} parent=5 // pred_check_branch
        %227 = sbr.rel (%p225) target = $region32
      $region31: #{grasp_proposal_forward.1} parent=5 // pred_region
        // Predicated region
        $region33: #{grasp_proposal_forward.1} parent=31 // pred_check
          %p228 = pneg %p47
        $region34: #{grasp_proposal_forward.1} parent=31 // pred_check_branch
          %230 = sbr.rel (%p228) target = $region36
        $region35: #{grasp_proposal_forward.1} parent=31 // pred_region
          %s231 = smul.u32 8, %s21
          %p232 = scmp.lt.s32.totalorder %s20, 1
          %s233 = scalar_select %p232, %s20, 1
          %p234 = scmp.lt.s32.totalorder %s231, 15
          %s235 = scalar_select %p234, %s231, 15
          %s236 = smul.addr %s233, 16
          %s237 = sadd.s32 %s235, %s236
          %s238 = smul.addr %s237, 8
          %s239 = scalar_lea.vmem %s0, %s238
          %s240 = smul.u32 8, %s21
        $region36: #{grasp_proposal_forward.1} parent=31 // pred_fallthru
          _
      $region32: #{grasp_proposal_forward.1} parent=5 // pred_fallthru
        _
      %p241 = scmp.le.s32.totalorder 1, %s13
      %p242 = scmp.lt.s32.totalorder %s13, 5
      %p243 = pnand %p241, %p242
      %p244 = pneg %p243
      // Predicated region
      $region37: #{grasp_proposal_forward.1} parent=5 // pred_check
        _
      $region38: #{grasp_proposal_forward.1} parent=5 // pred_check_branch
        %246 = sbr.rel (%p243) target = $region40
      $region39: #{grasp_proposal_forward.1} parent=5 // pred_region
        %s247 = ssub.s32 %s13, 1
        %s248 = smul.u32 8, %s23
        %p249 = scmp.lt.s32.totalorder %s22, 1
        %s250 = scalar_select %p249, %s22, 1
        %p251 = scmp.lt.s32.totalorder %s248, 15
        %s252 = scalar_select %p251, %s248, 15
        %s253 = smul.addr %s250, 16
        %s254 = sadd.s32 %s252, %s253
        %s255 = smul.addr %s254, 8
        %s256 = scalar_lea.vmem %s0, %s255
        %p257 = pneg %p53
        %p258 = pneg %p50
        %p259 = pneg %p74
        %p260 = pneg %p71
        %p261 = pneg %p95
        %p262 = pneg %p92
        %p263 = pneg %p116
        %p264 = pneg %p113
        %p265 = pneg %p137
        %p266 = pneg %p134
        %p267 = pneg %p165
        %p268 = pneg %p162
        %s269 = sand.u32 %s152, 1
        %s270 = sand.u32 %s152, 1
        %s271 = smul.addr %s270, 256
        %s272 = scalar_lea.vmem [#allocation2], %s271
        %p273 = pneg %p197
        %p274 = pneg %p194
        %p275 = scmp.lt.s32.totalorder %s23, 0
        %s276 = scalar_select %p275, %s23, 0
        %s277 = smul.u32 8, %s276
        %p278 = scmp.lt.s32.totalorder %s22, 1
        %s279 = scalar_select %p278, %s22, 1
        %p280 = scmp.lt.s32.totalorder %s277, 7
        %s281 = scalar_select %p280, %s277, 7
        %s282 = smul.addr %s279, 40
        %s283 = sadd.s32 %s281, %s282
        %s284 = smul.addr %s283, 8
        %s285 = scalar_lea.vmem %s6, %s284
        %s286 = smul.u32 8, %s23
        %p287 = scmp.lt.s32.totalorder %s22, 1
        %s288 = scalar_select %p287, %s22, 1
        %p289 = scmp.lt.s32.totalorder %s286, 15
        %s290 = scalar_select %p289, %s286, 15
        %s291 = smul.addr %s288, 16
        %s292 = sadd.s32 %s290, %s291
        %s293 = smul.addr %s292, 8
        %s294 = scalar_lea.vmem %s0, %s293
        %s295 = smul.u32 8, %s23
        %s296 = smul.u32 8, %s23
        %p297 = scmp.lt.s32.totalorder %s23, 0
        %s298 = scalar_select %p297, %s23, 0
        %s299 = smul.u32 8, %s298
        %p300 = scmp.lt.s32.totalorder %s22, 1
        %s301 = scalar_select %p300, %s22, 1
        %p302 = scmp.lt.s32.totalorder %s299, 7
        %s303 = scalar_select %p302, %s299, 7
        %s304 = smul.addr %s301, 40
        %s305 = sadd.s32 %s303, %s304
        %s306 = smul.addr %s305, 8
        %s307 = scalar_lea.vmem %s6, %s306
        %p308 = scmp.lt.s32.totalorder %s23, 0
        %s309 = scalar_select %p308, %s23, 0
        %s310 = smul.u32 8, %s309
        %v311 = vld [vmem:[%s294] sm:$0x3f]
        %v312 = vld [vmem:[%s294 + $0x8] sm:$0x3f]
        %v313 = vld [vmem:[%s294 + $0x10] sm:$0x3f]
        %v314 = vld [vmem:[%s294 + $0x18] sm:$0x3f]
        %v315 = vld [vmem:[%s294 + $0x20] sm:$0x3f]
        %v316 = vld [vmem:[%s294 + $0x28] sm:$0x3f]
        %v317 = vld [vmem:[%s294 + $0x30] sm:$0x3f]
        %v318 = vld [vmem:[%s294 + $0x38] sm:$0x3f]
        %v319 = vld [vmem:[%s1] sm:$0xff]
        %v320 = vld [vmem:[%s1 + $0x8] sm:$0xff]
        %v321 = vld [vmem:[%s1 + $0x10] sm:$0xff]
        %v322 = vld [vmem:[%s1 + $0x18] sm:$0xff]
        %v323 = vld [vmem:[%s2] sm:$0xff]
        %v324 = vld [vmem:[%s2 + $0x8] sm:$0xff]
        %v325 = vld [vmem:[%s2 + $0x10] sm:$0xff]
        %v326 = vld [vmem:[%s2 + $0x18] sm:$0xff]
        %328 = vset.pattern.permute.xlu0 0
        %329 = vperm.xlu0 %328, %v323
        %v330 = vpop.permute.xlu0 %329
        %333 = vset.pattern.permute.xlu0 0
        %334 = vperm.xlu0 %333, %v324
        %v335 = vpop.permute.xlu0 %334
        %338 = vset.pattern.permute.xlu0 0
        %339 = vperm.xlu0 %338, %v325
        %v340 = vpop.permute.xlu0 %339
        %343 = vset.pattern.permute.xlu0 0
        %344 = vperm.xlu0 %343, %v326
        %v345 = vpop.permute.xlu0 %344
        %vm347 = vcmask 48128
        %v349 = vsel %vm347, %v319, 0
        %v352 = vsel %vm347, %v320, 0
        %v355 = vsel %vm347, %v321, 0
        %v358 = vsel %vm347, %v322, 0
        %vm360 = vcmask 1045504
        %v362 = vsel %vm360, %v311, 0
        %v365 = vsel %vm360, %v312, 0
        %v368 = vsel %vm360, %v313, 0
        %v371 = vsel %vm360, %v314, 0
        %v374 = vsel %vm360, %v315, 0
        %v377 = vsel %vm360, %v316, 0
        %v380 = vsel %vm360, %v317, 0
        %v383 = vsel %vm360, %v318, 0
        %385 = vmatprep.subr.mxu0 0.0
        %386 = vmatpush1.msra.mxu0 0.0
        %387 = vmatprep.subr.mxu0 0.0
        %388 = vmatpush1.msra.mxu0 0.0
        %389 = vmatprep.subr.mxu0 0.0
        %390 = vmatpush1.msra.mxu0 0.0
        %391 = vmatprep.subr.mxu0 0.0
        %392 = vmatpush1.msra.mxu0 0.0
        %393 = vmatprep.subr.mxu0 0.0
        %394 = vmatpush1.msra.mxu0 0.0
        %395 = vmatprep.subr.mxu0 0.0
        %396 = vmatpush1.msra.mxu0 0.0
        %397 = vmatprep.subr.mxu0 0.0
        %398 = vmatpush1.msra.mxu0 0.0
        %399 = vmatprep.subr.mxu0 0.0
        %400 = vmatpush1.msra.mxu0 0.0
        %401 = vmatprep.subr.mxu0 0.0
        %402 = vmatpush1.msra.mxu0 0.0
        %403 = vmatprep.subr.mxu0 0.0
        %404 = vmatpush1.msra.mxu0 0.0
        %405 = vmatprep.subr.mxu0 0.0
        %406 = vmatpush1.msra.mxu0 0.0
        %407 = vmatprep.subr.mxu0 0.0
        %408 = vmatpush1.msra.mxu0 0.0
        %409 = vmatprep.subr.mxu0 0.0
        %410 = vmatpush1.msra.mxu0 0.0
        %411 = vmatprep.subr.mxu0 0.0
        %412 = vmatpush1.msra.mxu0 0.0
        %413 = vmatprep.subr.mxu0 0.0
        %414 = vmatpush1.msra.mxu0 0.0
        %415 = vmatprep.subr.mxu0 %v365
        %416 = vmatpush1.msra.mxu0 %v362
        %417 = vmatprep.subr.mxu0 0.0
        %418 = vmatpush2.msra.mxu0 0.0
        %419 = vmatprep.subr.mxu0 0.0
        %420 = vmatpush2.msra.mxu0 0.0
        %421 = vmatprep.subr.mxu0 0.0
        %422 = vmatpush2.msra.mxu0 0.0
        %423 = vmatprep.subr.mxu0 0.0
        %424 = vmatpush2.msra.mxu0 0.0
        %425 = vmatprep.subr.mxu0 0.0
        %426 = vmatpush2.msra.mxu0 0.0
        %427 = vmatprep.subr.mxu0 0.0
        %428 = vmatpush2.msra.mxu0 0.0
        %429 = vmatprep.subr.mxu0 0.0
        %430 = vmatpush2.msra.mxu0 0.0
        %431 = vmatprep.subr.mxu0 0.0
        %432 = vmatpush2.msra.mxu0 0.0
        %433 = vmatprep.subr.mxu0 0.0
        %434 = vmatpush2.msra.mxu0 0.0
        %435 = vmatprep.subr.mxu0 0.0
        %436 = vmatpush2.msra.mxu0 0.0
        %437 = vmatprep.subr.mxu0 0.0
        %438 = vmatpush2.msra.mxu0 0.0
        %439 = vmatprep.subr.mxu0 0.0
        %440 = vmatpush2.msra.mxu0 0.0
        %441 = vmatprep.subr.mxu0 0.0
        %442 = vmatpush2.msra.mxu0 0.0
        %443 = vmatprep.subr.mxu0 0.0
        %444 = vmatpush2.msra.mxu0 0.0
        %445 = vmatprep.subr.mxu0 0.0
        %446 = vmatpush2.msra.mxu0 0.0
        %447 = vmatprep.subr.mxu0 0.0
        %448 = vmatpush2.msra.mxu0 0.0
        %449 = vmatprep.mubr.f32.mxu0 0.0
        %450 = vmatmul.mubr.f32.gmra.mxu0 %v349
        %v451 = vpop.f32.mrf.mxu0
        %v452 = vadd.f32 %v330, %v451
        %v453 = vpop.f32.mrf.mxu0
        %v454 = vadd.f32 %v330, %v453
        %455 = vmatprep.mubr.f32.mxu0 0.0
        %456 = vmatmul.mubr.f32.gmra.mxu0 %v352
        %v457 = vpop.f32.mrf.mxu0
        %v458 = vadd.f32 %v335, %v457
        %v459 = vpop.f32.mrf.mxu0
        %v460 = vadd.f32 %v335, %v459
        %461 = vmatprep.mubr.f32.mxu0 0.0
        %462 = vmatmul.mubr.f32.gmra.mxu0 %v355
        %v463 = vpop.f32.mrf.mxu0
        %v464 = vadd.f32 %v340, %v463
        %v465 = vpop.f32.mrf.mxu0
        %v466 = vadd.f32 %v340, %v465
        %467 = vmatprep.mubr.f32.mxu0 0.0
        %468 = vmatmul.mubr.f32.gmra.mxu0 %v358
        %v469 = vpop.f32.mrf.mxu0
        %v470 = vadd.f32 %v345, %v469
        %v471 = vpop.f32.mrf.mxu0
        %v472 = vadd.f32 %v345, %v471
        %473 = vdwg.mxu0
        %474 = vmatprep.subr.mxu0 0.0
        %475 = vmatpush1.msra.mxu0 0.0
        %476 = vmatprep.subr.mxu0 0.0
        %477 = vmatpush1.msra.mxu0 0.0
        %478 = vmatprep.subr.mxu0 0.0
        %479 = vmatpush1.msra.mxu0 0.0
        %480 = vmatprep.subr.mxu0 0.0
        %481 = vmatpush1.msra.mxu0 0.0
        %482 = vmatprep.subr.mxu0 0.0
        %483 = vmatpush1.msra.mxu0 0.0
        %484 = vmatprep.subr.mxu0 0.0
        %485 = vmatpush1.msra.mxu0 0.0
        %486 = vmatprep.subr.mxu0 0.0
        %487 = vmatpush1.msra.mxu0 0.0
        %488 = vmatprep.subr.mxu0 0.0
        %489 = vmatpush1.msra.mxu0 0.0
        %490 = vmatprep.subr.mxu0 0.0
        %491 = vmatpush1.msra.mxu0 0.0
        %492 = vmatprep.subr.mxu0 0.0
        %493 = vmatpush1.msra.mxu0 0.0
        %494 = vmatprep.subr.mxu0 0.0
        %495 = vmatpush1.msra.mxu0 0.0
        %496 = vmatprep.subr.mxu0 0.0
        %497 = vmatpush1.msra.mxu0 0.0
        %498 = vmatprep.subr.mxu0 0.0
        %499 = vmatpush1.msra.mxu0 0.0
        %500 = vmatprep.subr.mxu0 0.0
        %501 = vmatpush1.msra.mxu0 0.0
        %502 = vmatprep.subr.mxu0 0.0
        %503 = vmatpush1.msra.mxu0 0.0
        %504 = vmatprep.subr.mxu0 %v371
        %505 = vmatpush1.msra.mxu0 %v368
        %506 = vmatprep.subr.mxu0 0.0
        %507 = vmatpush2.msra.mxu0 0.0
        %508 = vmatprep.subr.mxu0 0.0
        %509 = vmatpush2.msra.mxu0 0.0
        %510 = vmatprep.subr.mxu0 0.0
        %511 = vmatpush2.msra.mxu0 0.0
        %512 = vmatprep.subr.mxu0 0.0
        %513 = vmatpush2.msra.mxu0 0.0
        %514 = vmatprep.subr.mxu0 0.0
        %515 = vmatpush2.msra.mxu0 0.0
        %516 = vmatprep.subr.mxu0 0.0
        %517 = vmatpush2.msra.mxu0 0.0
        %518 = vmatprep.subr.mxu0 0.0
        %519 = vmatpush2.msra.mxu0 0.0
        %520 = vmatprep.subr.mxu0 0.0
        %521 = vmatpush2.msra.mxu0 0.0
        %522 = vmatprep.subr.mxu0 0.0
        %523 = vmatpush2.msra.mxu0 0.0
        %524 = vmatprep.subr.mxu0 0.0
        %525 = vmatpush2.msra.mxu0 0.0
        %526 = vmatprep.subr.mxu0 0.0
        %527 = vmatpush2.msra.mxu0 0.0
        %528 = vmatprep.subr.mxu0 0.0
        %529 = vmatpush2.msra.mxu0 0.0
        %530 = vmatprep.subr.mxu0 0.0
        %531 = vmatpush2.msra.mxu0 0.0
        %532 = vmatprep.subr.mxu0 0.0
        %533 = vmatpush2.msra.mxu0 0.0
        %534 = vmatprep.subr.mxu0 0.0
        %535 = vmatpush2.msra.mxu0 0.0
        %536 = vmatprep.subr.mxu0 0.0
        %537 = vmatpush2.msra.mxu0 0.0
        %538 = vmatprep.mubr.f32.mxu0 0.0
        %539 = vmatmul.mubr.f32.gmra.mxu0 %v349
        %v540 = vpop.f32.mrf.mxu0
        %v541 = vadd.f32 %v330, %v540
        %v542 = vpop.f32.mrf.mxu0
        %v543 = vadd.f32 %v330, %v542
        %544 = vmatprep.mubr.f32.mxu0 0.0
        %545 = vmatmul.mubr.f32.gmra.mxu0 %v352
        %v546 = vpop.f32.mrf.mxu0
        %v547 = vadd.f32 %v335, %v546
        %v548 = vpop.f32.mrf.mxu0
        %v549 = vadd.f32 %v335, %v548
        %550 = vmatprep.mubr.f32.mxu0 0.0
        %551 = vmatmul.mubr.f32.gmra.mxu0 %v355
        %v552 = vpop.f32.mrf.mxu0
        %v553 = vadd.f32 %v340, %v552
        %v554 = vpop.f32.mrf.mxu0
        %v555 = vadd.f32 %v340, %v554
        %556 = vmatprep.mubr.f32.mxu0 0.0
        %557 = vmatmul.mubr.f32.gmra.mxu0 %v358
        %v558 = vpop.f32.mrf.mxu0
        %v559 = vadd.f32 %v345, %v558
        %v560 = vpop.f32.mrf.mxu0
        %v561 = vadd.f32 %v345, %v560
        %562 = vdwg.mxu0
        %563 = vmatprep.subr.mxu0 0.0
        %564 = vmatpush1.msra.mxu0 0.0
        %565 = vmatprep.subr.mxu0 0.0
        %566 = vmatpush1.msra.mxu0 0.0
        %567 = vmatprep.subr.mxu0 0.0
        %568 = vmatpush1.msra.mxu0 0.0
        %569 = vmatprep.subr.mxu0 0.0
        %570 = vmatpush1.msra.mxu0 0.0
        %571 = vmatprep.subr.mxu0 0.0
        %572 = vmatpush1.msra.mxu0 0.0
        %573 = vmatprep.subr.mxu0 0.0
        %574 = vmatpush1.msra.mxu0 0.0
        %575 = vmatprep.subr.mxu0 0.0
        %576 = vmatpush1.msra.mxu0 0.0
        %577 = vmatprep.subr.mxu0 0.0
        %578 = vmatpush1.msra.mxu0 0.0
        %579 = vmatprep.subr.mxu0 0.0
        %580 = vmatpush1.msra.mxu0 0.0
        %581 = vmatprep.subr.mxu0 0.0
        %582 = vmatpush1.msra.mxu0 0.0
        %583 = vmatprep.subr.mxu0 0.0
        %584 = vmatpush1.msra.mxu0 0.0
        %585 = vmatprep.subr.mxu0 0.0
        %586 = vmatpush1.msra.mxu0 0.0
        %587 = vmatprep.subr.mxu0 0.0
        %588 = vmatpush1.msra.mxu0 0.0
        %589 = vmatprep.subr.mxu0 0.0
        %590 = vmatpush1.msra.mxu0 0.0
        %591 = vmatprep.subr.mxu0 0.0
        %592 = vmatpush1.msra.mxu0 0.0
        %593 = vmatprep.subr.mxu0 %v377
        %594 = vmatpush1.msra.mxu0 %v374
        %595 = vmatprep.subr.mxu0 0.0
        %596 = vmatpush2.msra.mxu0 0.0
        %597 = vmatprep.subr.mxu0 0.0
        %598 = vmatpush2.msra.mxu0 0.0
        %599 = vmatprep.subr.mxu0 0.0
        %600 = vmatpush2.msra.mxu0 0.0
        %601 = vmatprep.subr.mxu0 0.0
        %602 = vmatpush2.msra.mxu0 0.0
        %603 = vmatprep.subr.mxu0 0.0
        %604 = vmatpush2.msra.mxu0 0.0
        %605 = vmatprep.subr.mxu0 0.0
        %606 = vmatpush2.msra.mxu0 0.0
        %607 = vmatprep.subr.mxu0 0.0
        %608 = vmatpush2.msra.mxu0 0.0
        %609 = vmatprep.subr.mxu0 0.0
        %610 = vmatpush2.msra.mxu0 0.0
        %611 = vmatprep.subr.mxu0 0.0
        %612 = vmatpush2.msra.mxu0 0.0
        %613 = vmatprep.subr.mxu0 0.0
        %614 = vmatpush2.msra.mxu0 0.0
        %615 = vmatprep.subr.mxu0 0.0
        %616 = vmatpush2.msra.mxu0 0.0
        %617 = vmatprep.subr.mxu0 0.0
        %618 = vmatpush2.msra.mxu0 0.0
        %619 = vmatprep.subr.mxu0 0.0
        %620 = vmatpush2.msra.mxu0 0.0
        %621 = vmatprep.subr.mxu0 0.0
        %622 = vmatpush2.msra.mxu0 0.0
        %623 = vmatprep.subr.mxu0 0.0
        %624 = vmatpush2.msra.mxu0 0.0
        %625 = vmatprep.subr.mxu0 0.0
        %626 = vmatpush2.msra.mxu0 0.0
        %627 = vmatprep.mubr.f32.mxu0 0.0
        %628 = vmatmul.mubr.f32.gmra.mxu0 %v349
        %v629 = vpop.f32.mrf.mxu0
        %v630 = vadd.f32 %v330, %v629
        %v631 = vpop.f32.mrf.mxu0
        %v632 = vadd.f32 %v330, %v631
        %633 = vmatprep.mubr.f32.mxu0 0.0
        %634 = vmatmul.mubr.f32.gmra.mxu0 %v352
        %v635 = vpop.f32.mrf.mxu0
        %v636 = vadd.f32 %v335, %v635
        %v637 = vpop.f32.mrf.mxu0
        %v638 = vadd.f32 %v335, %v637
        %639 = vmatprep.mubr.f32.mxu0 0.0
        %640 = vmatmul.mubr.f32.gmra.mxu0 %v355
        %v641 = vpop.f32.mrf.mxu0
        %v642 = vadd.f32 %v340, %v641
        %v643 = vpop.f32.mrf.mxu0
        %v644 = vadd.f32 %v340, %v643
        %645 = vmatprep.mubr.f32.mxu0 0.0
        %646 = vmatmul.mubr.f32.gmra.mxu0 %v358
        %v647 = vpop.f32.mrf.mxu0
        %v648 = vadd.f32 %v345, %v647
        %v649 = vpop.f32.mrf.mxu0
        %v650 = vadd.f32 %v345, %v649
        %651 = vdwg.mxu0
        %652 = vmatprep.subr.mxu0 0.0
        %653 = vmatpush1.msra.mxu0 0.0
        %654 = vmatprep.subr.mxu0 0.0
        %655 = vmatpush1.msra.mxu0 0.0
        %656 = vmatprep.subr.mxu0 0.0
        %657 = vmatpush1.msra.mxu0 0.0
        %658 = vmatprep.subr.mxu0 0.0
        %659 = vmatpush1.msra.mxu0 0.0
        %660 = vmatprep.subr.mxu0 0.0
        %661 = vmatpush1.msra.mxu0 0.0
        %662 = vmatprep.subr.mxu0 0.0
        %663 = vmatpush1.msra.mxu0 0.0
        %664 = vmatprep.subr.mxu0 0.0
        %665 = vmatpush1.msra.mxu0 0.0
        %666 = vmatprep.subr.mxu0 0.0
        %667 = vmatpush1.msra.mxu0 0.0
        %668 = vmatprep.subr.mxu0 0.0
        %669 = vmatpush1.msra.mxu0 0.0
        %670 = vmatprep.subr.mxu0 0.0
        %671 = vmatpush1.msra.mxu0 0.0
        %672 = vmatprep.subr.mxu0 0.0
        %673 = vmatpush1.msra.mxu0 0.0
        %674 = vmatprep.subr.mxu0 0.0
        %675 = vmatpush1.msra.mxu0 0.0
        %676 = vmatprep.subr.mxu0 0.0
        %677 = vmatpush1.msra.mxu0 0.0
        %678 = vmatprep.subr.mxu0 0.0
        %679 = vmatpush1.msra.mxu0 0.0
        %680 = vmatprep.subr.mxu0 0.0
        %681 = vmatpush1.msra.mxu0 0.0
        %682 = vmatprep.subr.mxu0 %v383
        %683 = vmatpush1.msra.mxu0 %v380
        %684 = vmatprep.subr.mxu0 0.0
        %685 = vmatpush2.msra.mxu0 0.0
        %686 = vmatprep.subr.mxu0 0.0
        %687 = vmatpush2.msra.mxu0 0.0
        %688 = vmatprep.subr.mxu0 0.0
        %689 = vmatpush2.msra.mxu0 0.0
        %690 = vmatprep.subr.mxu0 0.0
        %691 = vmatpush2.msra.mxu0 0.0
        %692 = vmatprep.subr.mxu0 0.0
        %693 = vmatpush2.msra.mxu0 0.0
        %694 = vmatprep.subr.mxu0 0.0
        %695 = vmatpush2.msra.mxu0 0.0
        %696 = vmatprep.subr.mxu0 0.0
        %697 = vmatpush2.msra.mxu0 0.0
        %698 = vmatprep.subr.mxu0 0.0
        %699 = vmatpush2.msra.mxu0 0.0
        %700 = vmatprep.subr.mxu0 0.0
        %701 = vmatpush2.msra.mxu0 0.0
        %702 = vmatprep.subr.mxu0 0.0
        %703 = vmatpush2.msra.mxu0 0.0
        %704 = vmatprep.subr.mxu0 0.0
        %705 = vmatpush2.msra.mxu0 0.0
        %706 = vmatprep.subr.mxu0 0.0
        %707 = vmatpush2.msra.mxu0 0.0
        %708 = vmatprep.subr.mxu0 0.0
        %709 = vmatpush2.msra.mxu0 0.0
        %710 = vmatprep.subr.mxu0 0.0
        %711 = vmatpush2.msra.mxu0 0.0
        %712 = vmatprep.subr.mxu0 0.0
        %713 = vmatpush2.msra.mxu0 0.0
        %714 = vmatprep.subr.mxu0 0.0
        %715 = vmatpush2.msra.mxu0 0.0
        %716 = vmatprep.mubr.f32.mxu0 0.0
        %717 = vmatmul.mubr.f32.gmra.mxu0 %v349
        %v718 = vpop.f32.mrf.mxu0
        %v719 = vadd.f32 %v330, %v718
        %v720 = vpop.f32.mrf.mxu0
        %v721 = vadd.f32 %v330, %v720
        %722 = vmatprep.mubr.f32.mxu0 0.0
        %723 = vmatmul.mubr.f32.gmra.mxu0 %v352
        %v724 = vpop.f32.mrf.mxu0
        %v725 = vadd.f32 %v335, %v724
        %v726 = vpop.f32.mrf.mxu0
        %v727 = vadd.f32 %v335, %v726
        %728 = vmatprep.mubr.f32.mxu0 0.0
        %729 = vmatmul.mubr.f32.gmra.mxu0 %v355
        %v730 = vpop.f32.mrf.mxu0
        %v731 = vadd.f32 %v340, %v730
        %v732 = vpop.f32.mrf.mxu0
        %v733 = vadd.f32 %v340, %v732
        %734 = vmatprep.mubr.f32.mxu0 0.0
        %735 = vmatmul.mubr.f32.gmra.mxu0 %v358
        %v736 = vpop.f32.mrf.mxu0
        %v737 = vadd.f32 %v345, %v736
        %v738 = vpop.f32.mrf.mxu0
        %v739 = vadd.f32 %v345, %v738
        %740 = vdwg.mxu0
        %v741 = vmax.f32 %v452, 0.0
        %v742 = vmax.f32 %v454, 0.0
        %v743 = vmax.f32 %v541, 0.0
        %v744 = vmax.f32 %v543, 0.0
        %v745 = vmax.f32 %v630, 0.0
        %v746 = vmax.f32 %v632, 0.0
        %v747 = vmax.f32 %v719, 0.0
        %v748 = vmax.f32 %v721, 0.0
        %v749 = vmax.f32 %v458, 0.0
        %v750 = vmax.f32 %v460, 0.0
        %v751 = vmax.f32 %v547, 0.0
        %v752 = vmax.f32 %v549, 0.0
        %v753 = vmax.f32 %v636, 0.0
        %v754 = vmax.f32 %v638, 0.0
        %v755 = vmax.f32 %v725, 0.0
        %v756 = vmax.f32 %v727, 0.0
        %v757 = vmax.f32 %v464, 0.0
        %v758 = vmax.f32 %v466, 0.0
        %v759 = vmax.f32 %v553, 0.0
        %v760 = vmax.f32 %v555, 0.0
        %v761 = vmax.f32 %v642, 0.0
        %v762 = vmax.f32 %v644, 0.0
        %v763 = vmax.f32 %v731, 0.0
        %v764 = vmax.f32 %v733, 0.0
        %v765 = vmax.f32 %v470, 0.0
        %v766 = vmax.f32 %v472, 0.0
        %v767 = vmax.f32 %v559, 0.0
        %v768 = vmax.f32 %v561, 0.0
        %v769 = vmax.f32 %v648, 0.0
        %v770 = vmax.f32 %v650, 0.0
        %v771 = vmax.f32 %v737, 0.0
        %v772 = vmax.f32 %v739, 0.0
        %773 = vst [vmem:[%s272] sm:$0xff] %v741
        %774 = vst [vmem:[%s272 + $0x8] sm:$0xff] %v742
        %775 = vst [vmem:[%s272 + $0x10] sm:$0xff] %v743
        %776 = vst [vmem:[%s272 + $0x18] sm:$0xff] %v744
        %777 = vst [vmem:[%s272 + $0x20] sm:$0xff] %v745
        %778 = vst [vmem:[%s272 + $0x28] sm:$0xff] %v746
        %779 = vst [vmem:[%s272 + $0x30] sm:$0xff] %v747
        %780 = vst [vmem:[%s272 + $0x38] sm:$0xff] %v748
        %781 = vst [vmem:[%s272 + $0x40] sm:$0xff] %v749
        %782 = vst [vmem:[%s272 + $0x48] sm:$0xff] %v750
        %783 = vst [vmem:[%s272 + $0x50] sm:$0xff] %v751
        %784 = vst [vmem:[%s272 + $0x58] sm:$0xff] %v752
        %785 = vst [vmem:[%s272 + $0x60] sm:$0xff] %v753
        %786 = vst [vmem:[%s272 + $0x68] sm:$0xff] %v754
        %787 = vst [vmem:[%s272 + $0x70] sm:$0xff] %v755
        %788 = vst [vmem:[%s272 + $0x78] sm:$0xff] %v756
        %789 = vst [vmem:[%s272 + $0x80] sm:$0xff] %v757
        %790 = vst [vmem:[%s272 + $0x88] sm:$0xff] %v758
        %791 = vst [vmem:[%s272 + $0x90] sm:$0xff] %v759
        %792 = vst [vmem:[%s272 + $0x98] sm:$0xff] %v760
        %793 = vst [vmem:[%s272 + $0xa0] sm:$0xff] %v761
        %794 = vst [vmem:[%s272 + $0xa8] sm:$0xff] %v762
        %795 = vst [vmem:[%s272 + $0xb0] sm:$0xff] %v763
        %796 = vst [vmem:[%s272 + $0xb8] sm:$0xff] %v764
        %797 = vst [vmem:[%s272 + $0xc0] sm:$0xff] %v765
        %798 = vst [vmem:[%s272 + $0xc8] sm:$0xff] %v766
        %799 = vst [vmem:[%s272 + $0xd0] sm:$0xff] %v767
        %800 = vst [vmem:[%s272 + $0xd8] sm:$0xff] %v768
        %801 = vst [vmem:[%s272 + $0xe0] sm:$0xff] %v769
        %802 = vst [vmem:[%s272 + $0xe8] sm:$0xff] %v770
        %803 = vst [vmem:[%s272 + $0xf0] sm:$0xff] %v771
        %804 = vst [vmem:[%s272 + $0xf8] sm:$0xff] %v772
        %p805 = scmp.lt.s32.totalorder %s23, 1
        // Predicated region
        $region41: #{grasp_proposal_forward.1} parent=39 // pred_check
          %p806 = pneg %p805
        $region42: #{grasp_proposal_forward.1} parent=39 // pred_check_branch
          %808 = sbr.rel (%p806) target = $region44
        $region43: #{grasp_proposal_forward.1} parent=39 // pred_region
          %v809 = vld [vmem:[%s3] sm:$0xff]
          %v810 = vld [vmem:[%s3 + $0x8] sm:$0xff]
          %v811 = vld [vmem:[%s3 + $0x10] sm:$0xff]
          %v812 = vld [vmem:[%s3 + $0x18] sm:$0xff]
          %v813 = vld [vmem:[%s3 + $0x20] sm:$0xff]
          %v814 = vld [vmem:[%s3 + $0x28] sm:$0xf]
          %v815 = vld [vmem:[%s4] sm:$0xff]
          %v816 = vld [vmem:[%s4 + $0x8] sm:$0xff]
          %v817 = vld [vmem:[%s4 + $0x10] sm:$0xff]
          %v818 = vld [vmem:[%s4 + $0x18] sm:$0xff]
          %v819 = vld [vmem:[%s4 + $0x20] sm:$0xff]
          %v820 = vld [vmem:[%s4 + $0x28] sm:$0xf]
          %822 = vset.pattern.permute.xlu0 0
          %823 = vperm.xlu0 %822, %v815
          %v824 = vpop.permute.xlu0 %823
          %827 = vset.pattern.permute.xlu0 0
          %828 = vperm.xlu0 %827, %v816
          %v829 = vpop.permute.xlu0 %828
          %832 = vset.pattern.permute.xlu0 0
          %833 = vperm.xlu0 %832, %v817
          %v834 = vpop.permute.xlu0 %833
          %837 = vset.pattern.permute.xlu0 0
          %838 = vperm.xlu0 %837, %v818
          %v839 = vpop.permute.xlu0 %838
          %842 = vset.pattern.permute.xlu0 0
          %843 = vperm.xlu0 %842, %v819
          %v844 = vpop.permute.xlu0 %843
          %847 = vset.pattern.permute.xlu0 0
          %848 = vperm.xlu0 %847, %v820
          %v849 = vpop.permute.xlu0 %848
          %vm851 = vcmask 261120
          %v853 = vsel %vm851, %v809, 0
          %v856 = vsel %vm851, %v810, 0
          %v859 = vsel %vm851, %v811, 0
          %v862 = vsel %vm851, %v812, 0
          %v865 = vsel %vm851, %v813, 0
          %v868 = vsel %vm851, %v814, 0
          %870 = vmatprep.subr.mxu0 0.0
          %871 = vmatpush1.msra.mxu0 0.0
          %872 = vmatprep.subr.mxu0 0.0
          %873 = vmatpush1.msra.mxu0 0.0
          %874 = vmatprep.subr.mxu0 0.0
          %875 = vmatpush1.msra.mxu0 0.0
          %876 = vmatprep.subr.mxu0 0.0
          %877 = vmatpush1.msra.mxu0 0.0
          %878 = vmatprep.subr.mxu0 0.0
          %879 = vmatpush1.msra.mxu0 0.0
          %880 = vmatprep.subr.mxu0 0.0
          %881 = vmatpush1.msra.mxu0 0.0
          %882 = vmatprep.subr.mxu0 0.0
          %883 = vmatpush1.msra.mxu0 0.0
          %884 = vmatprep.subr.mxu0 0.0
          %885 = vmatpush1.msra.mxu0 0.0
          %886 = vmatprep.subr.mxu0 0.0
          %887 = vmatpush1.msra.mxu0 0.0
          %888 = vmatprep.subr.mxu0 0.0
          %889 = vmatpush1.msra.mxu0 0.0
          %890 = vmatprep.subr.mxu0 0.0
          %891 = vmatpush1.msra.mxu0 0.0
          %892 = vmatprep.subr.mxu0 0.0
          %893 = vmatpush1.msra.mxu0 0.0
          %894 = vmatprep.subr.mxu0 %v766
          %895 = vmatpush1.msra.mxu0 %v765
          %896 = vmatprep.subr.mxu0 %v758
          %897 = vmatpush1.msra.mxu0 %v757
          %898 = vmatprep.subr.mxu0 %v750
          %899 = vmatpush1.msra.mxu0 %v749
          %900 = vmatprep.subr.mxu0 %v742
          %901 = vmatpush1.msra.mxu0 %v741
          %902 = vmatprep.subr.mxu0 0.0
          %903 = vmatpush2.msra.mxu0 0.0
          %904 = vmatprep.subr.mxu0 0.0
          %905 = vmatpush2.msra.mxu0 0.0
          %906 = vmatprep.subr.mxu0 0.0
          %907 = vmatpush2.msra.mxu0 0.0
          %908 = vmatprep.subr.mxu0 0.0
          %909 = vmatpush2.msra.mxu0 0.0
          %910 = vmatprep.subr.mxu0 0.0
          %911 = vmatpush2.msra.mxu0 0.0
          %912 = vmatprep.subr.mxu0 0.0
          %913 = vmatpush2.msra.mxu0 0.0
          %914 = vmatprep.subr.mxu0 0.0
          %915 = vmatpush2.msra.mxu0 0.0
          %916 = vmatprep.subr.mxu0 0.0
          %917 = vmatpush2.msra.mxu0 0.0
          %918 = vmatprep.subr.mxu0 0.0
          %919 = vmatpush2.msra.mxu0 0.0
          %920 = vmatprep.subr.mxu0 0.0
          %921 = vmatpush2.msra.mxu0 0.0
          %922 = vmatprep.subr.mxu0 0.0
          %923 = vmatpush2.msra.mxu0 0.0
          %924 = vmatprep.subr.mxu0 0.0
          %925 = vmatpush2.msra.mxu0 0.0
          %926 = vmatprep.subr.mxu0 0.0
          %927 = vmatpush2.msra.mxu0 0.0
          %928 = vmatprep.subr.mxu0 0.0
          %929 = vmatpush2.msra.mxu0 0.0
          %930 = vmatprep.subr.mxu0 0.0
          %931 = vmatpush2.msra.mxu0 0.0
          %932 = vmatprep.subr.mxu0 0.0
          %933 = vmatpush2.msra.mxu0 0.0
          %934 = vmatprep.mubr.f32.mxu0 0.0
          %935 = vmatmul.mubr.f32.gmra.mxu0 %v853
          %v936 = vpop.f32.mrf.mxu0
          %v937 = vadd.f32 %v824, %v936
          %v938 = vpop.f32.mrf.mxu0
          %v939 = vadd.f32 %v824, %v938
          %940 = vmatprep.mubr.f32.mxu0 0.0
          %941 = vmatmul.mubr.f32.gmra.mxu0 %v856
          %v942 = vpop.f32.mrf.mxu0
          %v943 = vadd.f32 %v829, %v942
          %v944 = vpop.f32.mrf.mxu0
          %v945 = vadd.f32 %v829, %v944
          %946 = vmatprep.mubr.f32.mxu0 0.0
          %947 = vmatmul.mubr.f32.gmra.mxu0 %v859
          %v948 = vpop.f32.mrf.mxu0
          %v949 = vadd.f32 %v834, %v948
          %v950 = vpop.f32.mrf.mxu0
          %v951 = vadd.f32 %v834, %v950
          %952 = vmatprep.mubr.f32.mxu0 0.0
          %953 = vmatmul.mubr.f32.gmra.mxu0 %v862
          %v954 = vpop.f32.mrf.mxu0
          %v955 = vadd.f32 %v839, %v954
          %v956 = vpop.f32.mrf.mxu0
          %v957 = vadd.f32 %v839, %v956
          %958 = vmatprep.mubr.f32.mxu0 0.0
          %959 = vmatmul.mubr.f32.gmra.mxu0 %v865
          %v960 = vpop.f32.mrf.mxu0
          %v961 = vadd.f32 %v844, %v960
          %v962 = vpop.f32.mrf.mxu0
          %v963 = vadd.f32 %v844, %v962
          %964 = vmatprep.mubr.f32.mxu0 0.0
          %965 = vmatmul.mubr.f32.gmra.mxu0 %v868
          %v966 = vpop.f32.mrf.mxu0
          %v967 = vadd.f32 %v849, %v966
          %v968 = vpop.f32.mrf.mxu0
          %v969 = vadd.f32 %v849, %v968
          %970 = vdwg.mxu0
          %971 = vmatprep.subr.mxu0 0.0
          %972 = vmatpush1.msra.mxu0 0.0
          %973 = vmatprep.subr.mxu0 0.0
          %974 = vmatpush1.msra.mxu0 0.0
          %975 = vmatprep.subr.mxu0 0.0
          %976 = vmatpush1.msra.mxu0 0.0
          %977 = vmatprep.subr.mxu0 0.0
          %978 = vmatpush1.msra.mxu0 0.0
          %979 = vmatprep.subr.mxu0 0.0
          %980 = vmatpush1.msra.mxu0 0.0
          %981 = vmatprep.subr.mxu0 0.0
          %982 = vmatpush1.msra.mxu0 0.0
          %983 = vmatprep.subr.mxu0 0.0
          %984 = vmatpush1.msra.mxu0 0.0
          %985 = vmatprep.subr.mxu0 0.0
          %986 = vmatpush1.msra.mxu0 0.0
          %987 = vmatprep.subr.mxu0 0.0
          %988 = vmatpush1.msra.mxu0 0.0
          %989 = vmatprep.subr.mxu0 0.0
          %990 = vmatpush1.msra.mxu0 0.0
          %991 = vmatprep.subr.mxu0 0.0
          %992 = vmatpush1.msra.mxu0 0.0
          %993 = vmatprep.subr.mxu0 0.0
          %994 = vmatpush1.msra.mxu0 0.0
          %995 = vmatprep.subr.mxu0 %v768
          %996 = vmatpush1.msra.mxu0 %v767
          %997 = vmatprep.subr.mxu0 %v760
          %998 = vmatpush1.msra.mxu0 %v759
          %999 = vmatprep.subr.mxu0 %v752
          %1000 = vmatpush1.msra.mxu0 %v751
          %1001 = vmatprep.subr.mxu0 %v744
          %1002 = vmatpush1.msra.mxu0 %v743
          %1003 = vmatprep.subr.mxu0 0.0
          %1004 = vmatpush2.msra.mxu0 0.0
          %1005 = vmatprep.subr.mxu0 0.0
          %1006 = vmatpush2.msra.mxu0 0.0
          %1007 = vmatprep.subr.mxu0 0.0
          %1008 = vmatpush2.msra.mxu0 0.0
          %1009 = vmatprep.subr.mxu0 0.0
          %1010 = vmatpush2.msra.mxu0 0.0
          %1011 = vmatprep.subr.mxu0 0.0
          %1012 = vmatpush2.msra.mxu0 0.0
          %1013 = vmatprep.subr.mxu0 0.0
          %1014 = vmatpush2.msra.mxu0 0.0
          %1015 = vmatprep.subr.mxu0 0.0
          %1016 = vmatpush2.msra.mxu0 0.0
          %1017 = vmatprep.subr.mxu0 0.0
          %1018 = vmatpush2.msra.mxu0 0.0
          %1019 = vmatprep.subr.mxu0 0.0
          %1020 = vmatpush2.msra.mxu0 0.0
          %1021 = vmatprep.subr.mxu0 0.0
          %1022 = vmatpush2.msra.mxu0 0.0
          %1023 = vmatprep.subr.mxu0 0.0
          %1024 = vmatpush2.msra.mxu0 0.0
          %1025 = vmatprep.subr.mxu0 0.0
          %1026 = vmatpush2.msra.mxu0 0.0
          %1027 = vmatprep.subr.mxu0 0.0
          %1028 = vmatpush2.msra.mxu0 0.0
          %1029 = vmatprep.subr.mxu0 0.0
          %1030 = vmatpush2.msra.mxu0 0.0
          %1031 = vmatprep.subr.mxu0 0.0
          %1032 = vmatpush2.msra.mxu0 0.0
          %1033 = vmatprep.subr.mxu0 0.0
          %1034 = vmatpush2.msra.mxu0 0.0
          %1035 = vmatprep.mubr.f32.mxu0 0.0
          %1036 = vmatmul.mubr.f32.gmra.mxu0 %v853
          %v1037 = vpop.f32.mrf.mxu0
          %v1038 = vadd.f32 %v824, %v1037
          %v1039 = vpop.f32.mrf.mxu0
          %v1040 = vadd.f32 %v824, %v1039
          %1041 = vmatprep.mubr.f32.mxu0 0.0
          %1042 = vmatmul.mubr.f32.gmra.mxu0 %v856
          %v1043 = vpop.f32.mrf.mxu0
          %v1044 = vadd.f32 %v829, %v1043
          %v1045 = vpop.f32.mrf.mxu0
          %v1046 = vadd.f32 %v829, %v1045
          %1047 = vmatprep.mubr.f32.mxu0 0.0
          %1048 = vmatmul.mubr.f32.gmra.mxu0 %v859
          %v1049 = vpop.f32.mrf.mxu0
          %v1050 = vadd.f32 %v834, %v1049
          %v1051 = vpop.f32.mrf.mxu0
          %v1052 = vadd.f32 %v834, %v1051
          %1053 = vmatprep.mubr.f32.mxu0 0.0
          %1054 = vmatmul.mubr.f32.gmra.mxu0 %v862
          %v1055 = vpop.f32.mrf.mxu0
          %v1056 = vadd.f32 %v839, %v1055
          %v1057 = vpop.f32.mrf.mxu0
          %v1058 = vadd.f32 %v839, %v1057
          %1059 = vmatprep.mubr.f32.mxu0 0.0
          %1060 = vmatmul.mubr.f32.gmra.mxu0 %v865
          %v1061 = vpop.f32.mrf.mxu0
          %v1062 = vadd.f32 %v844, %v1061
          %v1063 = vpop.f32.mrf.mxu0
          %v1064 = vadd.f32 %v844, %v1063
          %1065 = vmatprep.mubr.f32.mxu0 0.0
          %1066 = vmatmul.mubr.f32.gmra.mxu0 %v868
          %v1067 = vpop.f32.mrf.mxu0
          %v1068 = vadd.f32 %v849, %v1067
          %v1069 = vpop.f32.mrf.mxu0
          %v1070 = vadd.f32 %v849, %v1069
          %1071 = vdwg.mxu0
          %1072 = vmatprep.subr.mxu0 0.0
          %1073 = vmatpush1.msra.mxu0 0.0
          %1074 = vmatprep.subr.mxu0 0.0
          %1075 = vmatpush1.msra.mxu0 0.0
          %1076 = vmatprep.subr.mxu0 0.0
          %1077 = vmatpush1.msra.mxu0 0.0
          %1078 = vmatprep.subr.mxu0 0.0
          %1079 = vmatpush1.msra.mxu0 0.0
          %1080 = vmatprep.subr.mxu0 0.0
          %1081 = vmatpush1.msra.mxu0 0.0
          %1082 = vmatprep.subr.mxu0 0.0
          %1083 = vmatpush1.msra.mxu0 0.0
          %1084 = vmatprep.subr.mxu0 0.0
          %1085 = vmatpush1.msra.mxu0 0.0
          %1086 = vmatprep.subr.mxu0 0.0
          %1087 = vmatpush1.msra.mxu0 0.0
          %1088 = vmatprep.subr.mxu0 0.0
          %1089 = vmatpush1.msra.mxu0 0.0
          %1090 = vmatprep.subr.mxu0 0.0
          %1091 = vmatpush1.msra.mxu0 0.0
          %1092 = vmatprep.subr.mxu0 0.0
          %1093 = vmatpush1.msra.mxu0 0.0
          %1094 = vmatprep.subr.mxu0 0.0
          %1095 = vmatpush1.msra.mxu0 0.0
          %1096 = vmatprep.subr.mxu0 %v770
          %1097 = vmatpush1.msra.mxu0 %v769
          %1098 = vmatprep.subr.mxu0 %v762
          %1099 = vmatpush1.msra.mxu0 %v761
          %1100 = vmatprep.subr.mxu0 %v754
          %1101 = vmatpush1.msra.mxu0 %v753
          %1102 = vmatprep.subr.mxu0 %v746
          %1103 = vmatpush1.msra.mxu0 %v745
          %1104 = vmatprep.subr.mxu0 0.0
          %1105 = vmatpush2.msra.mxu0 0.0
          %1106 = vmatprep.subr.mxu0 0.0
          %1107 = vmatpush2.msra.mxu0 0.0
          %1108 = vmatprep.subr.mxu0 0.0
          %1109 = vmatpush2.msra.mxu0 0.0
          %1110 = vmatprep.subr.mxu0 0.0
          %1111 = vmatpush2.msra.mxu0 0.0
          %1112 = vmatprep.subr.mxu0 0.0
          %1113 = vmatpush2.msra.mxu0 0.0
          %1114 = vmatprep.subr.mxu0 0.0
          %1115 = vmatpush2.msra.mxu0 0.0
          %1116 = vmatprep.subr.mxu0 0.0
          %1117 = vmatpush2.msra.mxu0 0.0
          %1118 = vmatprep.subr.mxu0 0.0
          %1119 = vmatpush2.msra.mxu0 0.0
          %1120 = vmatprep.subr.mxu0 0.0
          %1121 = vmatpush2.msra.mxu0 0.0
          %1122 = vmatprep.subr.mxu0 0.0
          %1123 = vmatpush2.msra.mxu0 0.0
          %1124 = vmatprep.subr.mxu0 0.0
          %1125 = vmatpush2.msra.mxu0 0.0
          %1126 = vmatprep.subr.mxu0 0.0
          %1127 = vmatpush2.msra.mxu0 0.0
          %1128 = vmatprep.subr.mxu0 0.0
          %1129 = vmatpush2.msra.mxu0 0.0
          %1130 = vmatprep.subr.mxu0 0.0
          %1131 = vmatpush2.msra.mxu0 0.0
          %1132 = vmatprep.subr.mxu0 0.0
          %1133 = vmatpush2.msra.mxu0 0.0
          %1134 = vmatprep.subr.mxu0 0.0
          %1135 = vmatpush2.msra.mxu0 0.0
          %1136 = vmatprep.mubr.f32.mxu0 0.0
          %1137 = vmatmul.mubr.f32.gmra.mxu0 %v853
          %v1138 = vpop.f32.mrf.mxu0
          %v1139 = vadd.f32 %v824, %v1138
          %v1140 = vpop.f32.mrf.mxu0
          %v1141 = vadd.f32 %v824, %v1140
          %1142 = vmatprep.mubr.f32.mxu0 0.0
          %1143 = vmatmul.mubr.f32.gmra.mxu0 %v856
          %v1144 = vpop.f32.mrf.mxu0
          %v1145 = vadd.f32 %v829, %v1144
          %v1146 = vpop.f32.mrf.mxu0
          %v1147 = vadd.f32 %v829, %v1146
          %1148 = vmatprep.mubr.f32.mxu0 0.0
          %1149 = vmatmul.mubr.f32.gmra.mxu0 %v859
          %v1150 = vpop.f32.mrf.mxu0
          %v1151 = vadd.f32 %v834, %v1150
          %v1152 = vpop.f32.mrf.mxu0
          %v1153 = vadd.f32 %v834, %v1152
          %1154 = vmatprep.mubr.f32.mxu0 0.0
          %1155 = vmatmul.mubr.f32.gmra.mxu0 %v862
          %v1156 = vpop.f32.mrf.mxu0
          %v1157 = vadd.f32 %v839, %v1156
          %v1158 = vpop.f32.mrf.mxu0
          %v1159 = vadd.f32 %v839, %v1158
          %1160 = vmatprep.mubr.f32.mxu0 0.0
          %1161 = vmatmul.mubr.f32.gmra.mxu0 %v865
          %v1162 = vpop.f32.mrf.mxu0
          %v1163 = vadd.f32 %v844, %v1162
          %v1164 = vpop.f32.mrf.mxu0
          %v1165 = vadd.f32 %v844, %v1164
          %1166 = vmatprep.mubr.f32.mxu0 0.0
          %1167 = vmatmul.mubr.f32.gmra.mxu0 %v868
          %v1168 = vpop.f32.mrf.mxu0
          %v1169 = vadd.f32 %v849, %v1168
          %v1170 = vpop.f32.mrf.mxu0
          %v1171 = vadd.f32 %v849, %v1170
          %1172 = vdwg.mxu0
          %1173 = vmatprep.subr.mxu0 0.0
          %1174 = vmatpush1.msra.mxu0 0.0
          %1175 = vmatprep.subr.mxu0 0.0
          %1176 = vmatpush1.msra.mxu0 0.0
          %1177 = vmatprep.subr.mxu0 0.0
          %1178 = vmatpush1.msra.mxu0 0.0
          %1179 = vmatprep.subr.mxu0 0.0
          %1180 = vmatpush1.msra.mxu0 0.0
          %1181 = vmatprep.subr.mxu0 0.0
          %1182 = vmatpush1.msra.mxu0 0.0
          %1183 = vmatprep.subr.mxu0 0.0
          %1184 = vmatpush1.msra.mxu0 0.0
          %1185 = vmatprep.subr.mxu0 0.0
          %1186 = vmatpush1.msra.mxu0 0.0
          %1187 = vmatprep.subr.mxu0 0.0
          %1188 = vmatpush1.msra.mxu0 0.0
          %1189 = vmatprep.subr.mxu0 0.0
          %1190 = vmatpush1.msra.mxu0 0.0
          %1191 = vmatprep.subr.mxu0 0.0
          %1192 = vmatpush1.msra.mxu0 0.0
          %1193 = vmatprep.subr.mxu0 0.0
          %1194 = vmatpush1.msra.mxu0 0.0
          %1195 = vmatprep.subr.mxu0 0.0
          %1196 = vmatpush1.msra.mxu0 0.0
          %1197 = vmatprep.subr.mxu0 %v772
          %1198 = vmatpush1.msra.mxu0 %v771
          %1199 = vmatprep.subr.mxu0 %v764
          %1200 = vmatpush1.msra.mxu0 %v763
          %1201 = vmatprep.subr.mxu0 %v756
          %1202 = vmatpush1.msra.mxu0 %v755
          %1203 = vmatprep.subr.mxu0 %v748
          %1204 = vmatpush1.msra.mxu0 %v747
          %1205 = vmatprep.subr.mxu0 0.0
          %1206 = vmatpush2.msra.mxu0 0.0
          %1207 = vmatprep.subr.mxu0 0.0
          %1208 = vmatpush2.msra.mxu0 0.0
          %1209 = vmatprep.subr.mxu0 0.0
          %1210 = vmatpush2.msra.mxu0 0.0
          %1211 = vmatprep.subr.mxu0 0.0
          %1212 = vmatpush2.msra.mxu0 0.0
          %1213 = vmatprep.subr.mxu0 0.0
          %1214 = vmatpush2.msra.mxu0 0.0
          %1215 = vmatprep.subr.mxu0 0.0
          %1216 = vmatpush2.msra.mxu0 0.0
          %1217 = vmatprep.subr.mxu0 0.0
          %1218 = vmatpush2.msra.mxu0 0.0
          %1219 = vmatprep.subr.mxu0 0.0
          %1220 = vmatpush2.msra.mxu0 0.0
          %1221 = vmatprep.subr.mxu0 0.0
          %1222 = vmatpush2.msra.mxu0 0.0
          %1223 = vmatprep.subr.mxu0 0.0
          %1224 = vmatpush2.msra.mxu0 0.0
          %1225 = vmatprep.subr.mxu0 0.0
          %1226 = vmatpush2.msra.mxu0 0.0
          %1227 = vmatprep.subr.mxu0 0.0
          %1228 = vmatpush2.msra.mxu0 0.0
          %1229 = vmatprep.subr.mxu0 0.0
          %1230 = vmatpush2.msra.mxu0 0.0
          %1231 = vmatprep.subr.mxu0 0.0
          %1232 = vmatpush2.msra.mxu0 0.0
          %1233 = vmatprep.subr.mxu0 0.0
          %1234 = vmatpush2.msra.mxu0 0.0
          %1235 = vmatprep.subr.mxu0 0.0
          %1236 = vmatpush2.msra.mxu0 0.0
          %1237 = vmatprep.mubr.f32.mxu0 0.0
          %1238 = vmatmul.mubr.f32.gmra.mxu0 %v853
          %v1239 = vpop.f32.mrf.mxu0
          %v1240 = vadd.f32 %v824, %v1239
          %v1241 = vpop.f32.mrf.mxu0
          %v1242 = vadd.f32 %v824, %v1241
          %1243 = vmatprep.mubr.f32.mxu0 0.0
          %1244 = vmatmul.mubr.f32.gmra.mxu0 %v856
          %v1245 = vpop.f32.mrf.mxu0
          %v1246 = vadd.f32 %v829, %v1245
          %v1247 = vpop.f32.mrf.mxu0
          %v1248 = vadd.f32 %v829, %v1247
          %1249 = vmatprep.mubr.f32.mxu0 0.0
          %1250 = vmatmul.mubr.f32.gmra.mxu0 %v859
          %v1251 = vpop.f32.mrf.mxu0
          %v1252 = vadd.f32 %v834, %v1251
          %v1253 = vpop.f32.mrf.mxu0
          %v1254 = vadd.f32 %v834, %v1253
          %1255 = vmatprep.mubr.f32.mxu0 0.0
          %1256 = vmatmul.mubr.f32.gmra.mxu0 %v862
          %v1257 = vpop.f32.mrf.mxu0
          %v1258 = vadd.f32 %v839, %v1257
          %v1259 = vpop.f32.mrf.mxu0
          %v1260 = vadd.f32 %v839, %v1259
          %1261 = vmatprep.mubr.f32.mxu0 0.0
          %1262 = vmatmul.mubr.f32.gmra.mxu0 %v865
          %v1263 = vpop.f32.mrf.mxu0
          %v1264 = vadd.f32 %v844, %v1263
          %v1265 = vpop.f32.mrf.mxu0
          %v1266 = vadd.f32 %v844, %v1265
          %1267 = vmatprep.mubr.f32.mxu0 0.0
          %1268 = vmatmul.mubr.f32.gmra.mxu0 %v868
          %v1269 = vpop.f32.mrf.mxu0
          %v1270 = vadd.f32 %v849, %v1269
          %v1271 = vpop.f32.mrf.mxu0
          %v1272 = vadd.f32 %v849, %v1271
          %1273 = vdwg.mxu0
          %v1282 = vrot.slane %v937, 4
          %v1283 = vrot.slane %v939, 4
          %v1284 = vrot.slane %v1038, 4
          %v1285 = vrot.slane %v1040, 4
          %v1286 = vrot.slane %v1139, 4
          %v1287 = vrot.slane %v1141, 4
          %v1288 = vrot.slane %v1240, 4
          %v1289 = vrot.slane %v1242, 4
          %vm1298 = vcmp.gt.f32.partialorder %v937, %v1282
          %vm1299 = vcmp.gt.f32.partialorder %v939, %v1283
          %vm1300 = vcmp.gt.f32.partialorder %v1038, %v1284
          %vm1301 = vcmp.gt.f32.partialorder %v1040, %v1285
          %vm1302 = vcmp.gt.f32.partialorder %v1139, %v1286
          %vm1303 = vcmp.gt.f32.partialorder %v1141, %v1287
          %vm1304 = vcmp.gt.f32.partialorder %v1240, %v1288
          %vm1305 = vcmp.gt.f32.partialorder %v1242, %v1289
          %v1306 = vlaneseq
          %v1307 = vshrl.u32 %v1306, 7
          %v1308 = vsub.s32 0, %v1307
          %v1309 = vrot.slane %v311, %v1308
          %v1310 = vlaneseq
          %v1311 = vshrl.u32 %v1310, 7
          %v1312 = vsub.s32 0, %v1311
          %v1313 = vrot.slane %v312, %v1312
          %v1314 = vlaneseq
          %v1315 = vshrl.u32 %v1314, 7
          %v1316 = vsub.s32 0, %v1315
          %v1317 = vrot.slane %v313, %v1316
          %v1318 = vlaneseq
          %v1319 = vshrl.u32 %v1318, 7
          %v1320 = vsub.s32 0, %v1319
          %v1321 = vrot.slane %v314, %v1320
          %v1322 = vlaneseq
          %v1323 = vshrl.u32 %v1322, 7
          %v1324 = vsub.s32 0, %v1323
          %v1325 = vrot.slane %v315, %v1324
          %v1326 = vlaneseq
          %v1327 = vshrl.u32 %v1326, 7
          %v1328 = vsub.s32 0, %v1327
          %v1329 = vrot.slane %v316, %v1328
          %v1330 = vlaneseq
          %v1331 = vshrl.u32 %v1330, 7
          %v1332 = vsub.s32 0, %v1331
          %v1333 = vrot.slane %v317, %v1332
          %v1334 = vlaneseq
          %v1335 = vshrl.u32 %v1334, 7
          %v1336 = vsub.s32 0, %v1335
          %v1337 = vrot.slane %v318, %v1336
          %v1338 = vadd.f32 %v943, %v1309
          %v1339 = vadd.f32 %v945, %v1313
          %v1340 = vadd.f32 %v1044, %v1317
          %v1341 = vadd.f32 %v1046, %v1321
          %v1342 = vadd.f32 %v1145, %v1325
          %v1343 = vadd.f32 %v1147, %v1329
          %v1344 = vadd.f32 %v1246, %v1333
          %v1345 = vadd.f32 %v1248, %v1337
          %v1346 = vlaneseq
          %v1347 = vshrl.u32 %v1346, 7
          %v1348 = vsub.s32 1, %v1347
          %v1349 = vrot.slane %v311, %v1348
          %v1350 = vlaneseq
          %v1351 = vshrl.u32 %v1350, 7
          %v1352 = vsub.s32 1, %v1351
          %v1353 = vrot.slane %v312, %v1352
          %v1354 = vlaneseq
          %v1355 = vshrl.u32 %v1354, 7
          %v1356 = vsub.s32 1, %v1355
          %v1357 = vrot.slane %v313, %v1356
          %v1358 = vlaneseq
          %v1359 = vshrl.u32 %v1358, 7
          %v1360 = vsub.s32 1, %v1359
          %v1361 = vrot.slane %v314, %v1360
          %v1362 = vlaneseq
          %v1363 = vshrl.u32 %v1362, 7
          %v1364 = vsub.s32 1, %v1363
          %v1365 = vrot.slane %v315, %v1364
          %v1366 = vlaneseq
          %v1367 = vshrl.u32 %v1366, 7
          %v1368 = vsub.s32 1, %v1367
          %v1369 = vrot.slane %v316, %v1368
          %v1370 = vlaneseq
          %v1371 = vshrl.u32 %v1370, 7
          %v1372 = vsub.s32 1, %v1371
          %v1373 = vrot.slane %v317, %v1372
          %v1374 = vlaneseq
          %v1375 = vshrl.u32 %v1374, 7
          %v1376 = vsub.s32 1, %v1375
          %v1377 = vrot.slane %v318, %v1376
          %v1378 = vadd.f32 %v943, %v1349
          %v1379 = vadd.f32 %v945, %v1353
          %v1380 = vadd.f32 %v1044, %v1357
          %v1381 = vadd.f32 %v1046, %v1361
          %v1382 = vadd.f32 %v1145, %v1365
          %v1383 = vadd.f32 %v1147, %v1369
          %v1384 = vadd.f32 %v1246, %v1373
          %v1385 = vadd.f32 %v1248, %v1377
          %v1386 = vlaneseq
          %v1387 = vshrl.u32 %v1386, 7
          %v1388 = vsub.s32 2, %v1387
          %v1389 = vrot.slane %v311, %v1388
          %v1390 = vlaneseq
          %v1391 = vshrl.u32 %v1390, 7
          %v1392 = vsub.s32 2, %v1391
          %v1393 = vrot.slane %v312, %v1392
          %v1394 = vlaneseq
          %v1395 = vshrl.u32 %v1394, 7
          %v1396 = vsub.s32 2, %v1395
          %v1397 = vrot.slane %v313, %v1396
          %v1398 = vlaneseq
          %v1399 = vshrl.u32 %v1398, 7
          %v1400 = vsub.s32 2, %v1399
          %v1401 = vrot.slane %v314, %v1400
          %v1402 = vlaneseq
          %v1403 = vshrl.u32 %v1402, 7
          %v1404 = vsub.s32 2, %v1403
          %v1405 = vrot.slane %v315, %v1404
          %v1406 = vlaneseq
          %v1407 = vshrl.u32 %v1406, 7
          %v1408 = vsub.s32 2, %v1407
          %v1409 = vrot.slane %v316, %v1408
          %v1410 = vlaneseq
          %v1411 = vshrl.u32 %v1410, 7
          %v1412 = vsub.s32 2, %v1411
          %v1413 = vrot.slane %v317, %v1412
          %v1414 = vlaneseq
          %v1415 = vshrl.u32 %v1414, 7
          %v1416 = vsub.s32 2, %v1415
          %v1417 = vrot.slane %v318, %v1416
          %v1418 = vadd.f32 %v949, %v1389
          %v1419 = vadd.f32 %v951, %v1393
          %v1420 = vadd.f32 %v1050, %v1397
          %v1421 = vadd.f32 %v1052, %v1401
          %v1422 = vadd.f32 %v1151, %v1405
          %v1423 = vadd.f32 %v1153, %v1409
          %v1424 = vadd.f32 %v1252, %v1413
          %v1425 = vadd.f32 %v1254, %v1417
          %v1426 = vmul.f32 %v949, %v949
          %v1427 = vmul.f32 %v951, %v951
          %v1428 = vmul.f32 %v1050, %v1050
          %v1429 = vmul.f32 %v1052, %v1052
          %v1430 = vmul.f32 %v1151, %v1151
          %v1431 = vmul.f32 %v1153, %v1153
          %v1432 = vmul.f32 %v1252, %v1252
          %v1433 = vmul.f32 %v1254, %v1254
          %v1434 = vmul.f32 %v955, %v955
          %v1435 = vmul.f32 %v957, %v957
          %v1436 = vmul.f32 %v1056, %v1056
          %v1437 = vmul.f32 %v1058, %v1058
          %v1438 = vmul.f32 %v1157, %v1157
          %v1439 = vmul.f32 %v1159, %v1159
          %v1440 = vmul.f32 %v1258, %v1258
          %v1441 = vmul.f32 %v1260, %v1260
          %v1450 = vrot.slane %v1434, 4
          %v1451 = vrot.slane %v1435, 4
          %v1452 = vrot.slane %v1436, 4
          %v1453 = vrot.slane %v1437, 4
          %v1454 = vrot.slane %v1438, 4
          %v1455 = vrot.slane %v1439, 4
          %v1456 = vrot.slane %v1440, 4
          %v1457 = vrot.slane %v1441, 4
          %v1466 = vadd.f32 %v1426, %v1450
          %v1467 = vadd.f32 %v1427, %v1451
          %v1468 = vadd.f32 %v1428, %v1452
          %v1469 = vadd.f32 %v1429, %v1453
          %v1470 = vadd.f32 %v1430, %v1454
          %v1471 = vadd.f32 %v1431, %v1455
          %v1472 = vadd.f32 %v1432, %v1456
          %v1473 = vadd.f32 %v1433, %v1457
          %v1474 = vadd.f32 %v1466, %v1434
          %v1475 = vadd.f32 %v1467, %v1435
          %v1476 = vadd.f32 %v1468, %v1436
          %v1477 = vadd.f32 %v1469, %v1437
          %v1478 = vadd.f32 %v1470, %v1438
          %v1479 = vadd.f32 %v1471, %v1439
          %v1480 = vadd.f32 %v1472, %v1440
          %v1481 = vadd.f32 %v1473, %v1441
          %v1482 = vadd.f32 %v1474, 1e-12
          %v1483 = vadd.f32 %v1475, 1e-12
          %v1484 = vadd.f32 %v1476, 1e-12
          %v1485 = vadd.f32 %v1477, 1e-12
          %v1486 = vadd.f32 %v1478, 1e-12
          %v1487 = vadd.f32 %v1479, 1e-12
          %v1488 = vadd.f32 %v1480, 1e-12
          %v1489 = vadd.f32 %v1481, 1e-12
          %v1490 = vrsqrt.pop %v1482
          %v1491 = vrsqrt.pop %v1483
          %v1492 = vrsqrt.pop %v1484
          %v1493 = vrsqrt.pop %v1485
          %v1494 = vrsqrt.pop %v1486
          %v1495 = vrsqrt.pop %v1487
          %v1496 = vrsqrt.pop %v1488
          %v1497 = vrsqrt.pop %v1489
          %v1506 = vrot.slane %v1338, 4
          %v1507 = vrot.slane %v1339, 4
          %v1508 = vrot.slane %v1340, 4
          %v1509 = vrot.slane %v1341, 4
          %v1510 = vrot.slane %v1342, 4
          %v1511 = vrot.slane %v1343, 4
          %v1512 = vrot.slane %v1344, 4
          %v1513 = vrot.slane %v1345, 4
          %v1522 = vsel %vm1298, %v1506, -1.0
          %v1523 = vsel %vm1299, %v1507, -1.0
          %v1524 = vsel %vm1300, %v1508, -1.0
          %v1525 = vsel %vm1301, %v1509, -1.0
          %v1526 = vsel %vm1302, %v1510, -1.0
          %v1527 = vsel %vm1303, %v1511, -1.0
          %v1528 = vsel %vm1304, %v1512, -1.0
          %v1529 = vsel %vm1305, %v1513, -1.0
          %v1530 = vsel %vm1298, %v1378, -1.0
          %v1531 = vsel %vm1299, %v1379, -1.0
          %v1532 = vsel %vm1300, %v1380, -1.0
          %v1533 = vsel %vm1301, %v1381, -1.0
          %v1534 = vsel %vm1302, %v1382, -1.0
          %v1535 = vsel %vm1303, %v1383, -1.0
          %v1536 = vsel %vm1304, %v1384, -1.0
          %v1537 = vsel %vm1305, %v1385, -1.0
          %v1546 = vrot.slane %v1418, 4
          %v1547 = vrot.slane %v1419, 4
          %v1548 = vrot.slane %v1420, 4
          %v1549 = vrot.slane %v1421, 4
          %v1550 = vrot.slane %v1422, 4
          %v1551 = vrot.slane %v1423, 4
          %v1552 = vrot.slane %v1424, 4
          %v1553 = vrot.slane %v1425, 4
          %v1562 = vsel %vm1298, %v1546, -1.0
          %v1563 = vsel %vm1299, %v1547, -1.0
          %v1564 = vsel %vm1300, %v1548, -1.0
          %v1565 = vsel %vm1301, %v1549, -1.0
          %v1566 = vsel %vm1302, %v1550, -1.0
          %v1567 = vsel %vm1303, %v1551, -1.0
          %v1568 = vsel %vm1304, %v1552, -1.0
          %v1569 = vsel %vm1305, %v1553, -1.0
          %v1570 = vmul.f32 %v949, %v1490
          %v1571 = vmul.f32 %v951, %v1491
          %v1572 = vmul.f32 %v1050, %v1492
          %v1573 = vmul.f32 %v1052, %v1493
          %v1574 = vmul.f32 %v1151, %v1494
          %v1575 = vmul.f32 %v1153, %v1495
          %v1576 = vmul.f32 %v1252, %v1496
          %v1577 = vmul.f32 %v1254, %v1497
          %v1578 = vsel %vm1298, %v1570, -1.0
          %v1579 = vsel %vm1299, %v1571, -1.0
          %v1580 = vsel %vm1300, %v1572, -1.0
          %v1581 = vsel %vm1301, %v1573, -1.0
          %v1582 = vsel %vm1302, %v1574, -1.0
          %v1583 = vsel %vm1303, %v1575, -1.0
          %v1584 = vsel %vm1304, %v1576, -1.0
          %v1585 = vsel %vm1305, %v1577, -1.0
          %v1594 = vrot.slane %v1490, 4
          %v1595 = vrot.slane %v1491, 4
          %v1596 = vrot.slane %v1492, 4
          %v1597 = vrot.slane %v1493, 4
          %v1598 = vrot.slane %v1494, 4
          %v1599 = vrot.slane %v1495, 4
          %v1600 = vrot.slane %v1496, 4
          %v1601 = vrot.slane %v1497, 4
          %v1610 = vmul.f32 %v955, %v1594
          %v1611 = vmul.f32 %v957, %v1595
          %v1612 = vmul.f32 %v1056, %v1596
          %v1613 = vmul.f32 %v1058, %v1597
          %v1614 = vmul.f32 %v1157, %v1598
          %v1615 = vmul.f32 %v1159, %v1599
          %v1616 = vmul.f32 %v1258, %v1600
          %v1617 = vmul.f32 %v1260, %v1601
          %v1626 = vrot.slane %v1610, 4
          %v1627 = vrot.slane %v1611, 4
          %v1628 = vrot.slane %v1612, 4
          %v1629 = vrot.slane %v1613, 4
          %v1630 = vrot.slane %v1614, 4
          %v1631 = vrot.slane %v1615, 4
          %v1632 = vrot.slane %v1616, 4
          %v1633 = vrot.slane %v1617, 4
          %v1642 = vsel %vm1298, %v1626, -1.0
          %v1643 = vsel %vm1299, %v1627, -1.0
          %v1644 = vsel %vm1300, %v1628, -1.0
          %v1645 = vsel %vm1301, %v1629, -1.0
          %v1646 = vsel %vm1302, %v1630, -1.0
          %v1647 = vsel %vm1303, %v1631, -1.0
          %v1648 = vsel %vm1304, %v1632, -1.0
          %v1649 = vsel %vm1305, %v1633, -1.0
          %v1650 = vmul.f32 %v955, %v1490
          %v1651 = vmul.f32 %v957, %v1491
          %v1652 = vmul.f32 %v1056, %v1492
          %v1653 = vmul.f32 %v1058, %v1493
          %v1654 = vmul.f32 %v1157, %v1494
          %v1655 = vmul.f32 %v1159, %v1495
          %v1656 = vmul.f32 %v1258, %v1496
          %v1657 = vmul.f32 %v1260, %v1497
          %v1658 = vsel %vm1298, %v1650, -1.0
          %v1659 = vsel %vm1299, %v1651, -1.0
          %v1660 = vsel %vm1300, %v1652, -1.0
          %v1661 = vsel %vm1301, %v1653, -1.0
          %v1662 = vsel %vm1302, %v1654, -1.0
          %v1663 = vsel %vm1303, %v1655, -1.0
          %v1664 = vsel %vm1304, %v1656, -1.0
          %v1665 = vsel %vm1305, %v1657, -1.0
          %v1674 = vrot.slane %v961, 4
          %v1675 = vrot.slane %v963, 4
          %v1676 = vrot.slane %v1062, 4
          %v1677 = vrot.slane %v1064, 4
          %v1678 = vrot.slane %v1163, 4
          %v1679 = vrot.slane %v1165, 4
          %v1680 = vrot.slane %v1264, 4
          %v1681 = vrot.slane %v1266, 4
          %v1690 = vsel %vm1298, %v1674, -1.0
          %v1691 = vsel %vm1299, %v1675, -1.0
          %v1692 = vsel %vm1300, %v1676, -1.0
          %v1693 = vsel %vm1301, %v1677, -1.0
          %v1694 = vsel %vm1302, %v1678, -1.0
          %v1695 = vsel %vm1303, %v1679, -1.0
          %v1696 = vsel %vm1304, %v1680, -1.0
          %v1697 = vsel %vm1305, %v1681, -1.0
          %v1698 = vsel %vm1298, %v961, -1.0
          %v1699 = vsel %vm1299, %v963, -1.0
          %v1700 = vsel %vm1300, %v1062, -1.0
          %v1701 = vsel %vm1301, %v1064, -1.0
          %v1702 = vsel %vm1302, %v1163, -1.0
          %v1703 = vsel %vm1303, %v1165, -1.0
          %v1704 = vsel %vm1304, %v1264, -1.0
          %v1705 = vsel %vm1305, %v1266, -1.0
          %v1714 = vrot.slane %v967, 4
          %v1715 = vrot.slane %v969, 4
          %v1716 = vrot.slane %v1068, 4
          %v1717 = vrot.slane %v1070, 4
          %v1718 = vrot.slane %v1169, 4
          %v1719 = vrot.slane %v1171, 4
          %v1720 = vrot.slane %v1270, 4
          %v1721 = vrot.slane %v1272, 4
          %v1730 = vsel %vm1298, %v1714, -1.0
          %v1731 = vsel %vm1299, %v1715, -1.0
          %v1732 = vsel %vm1300, %v1716, -1.0
          %v1733 = vsel %vm1301, %v1717, -1.0
          %v1734 = vsel %vm1302, %v1718, -1.0
          %v1735 = vsel %vm1303, %v1719, -1.0
          %v1736 = vsel %vm1304, %v1720, -1.0
          %v1737 = vsel %vm1305, %v1721, -1.0
          %v1746 = vrot.slane %v1522, 4
          %v1747 = vrot.slane %v1523, 4
          %v1748 = vrot.slane %v1524, 4
          %v1749 = vrot.slane %v1525, 4
          %v1750 = vrot.slane %v1526, 4
          %v1751 = vrot.slane %v1527, 4
          %v1752 = vrot.slane %v1528, 4
          %v1753 = vrot.slane %v1529, 4
          %v1770 = vrot.slane %v1562, 4
          %v1771 = vrot.slane %v1563, 4
          %v1772 = vrot.slane %v1564, 4
          %v1773 = vrot.slane %v1565, 4
          %v1774 = vrot.slane %v1566, 4
          %v1775 = vrot.slane %v1567, 4
          %v1776 = vrot.slane %v1568, 4
          %v1777 = vrot.slane %v1569, 4
          %v1794 = vrot.slane %v1642, 4
          %v1795 = vrot.slane %v1643, 4
          %v1796 = vrot.slane %v1644, 4
          %v1797 = vrot.slane %v1645, 4
          %v1798 = vrot.slane %v1646, 4
          %v1799 = vrot.slane %v1647, 4
          %v1800 = vrot.slane %v1648, 4
          %v1801 = vrot.slane %v1649, 4
          %v1818 = vrot.slane %v1690, 4
          %v1819 = vrot.slane %v1691, 4
          %v1820 = vrot.slane %v1692, 4
          %v1821 = vrot.slane %v1693, 4
          %v1822 = vrot.slane %v1694, 4
          %v1823 = vrot.slane %v1695, 4
          %v1824 = vrot.slane %v1696, 4
          %v1825 = vrot.slane %v1697, 4
          %v1842 = vrot.slane %v1730, 4
          %v1843 = vrot.slane %v1731, 4
          %v1844 = vrot.slane %v1732, 4
          %v1845 = vrot.slane %v1733, 4
          %v1846 = vrot.slane %v1734, 4
          %v1847 = vrot.slane %v1735, 4
          %v1848 = vrot.slane %v1736, 4
          %v1849 = vrot.slane %v1737, 4
          %vm1858 = vcmask 1043456
          %v1859 = vsel %vm1858, %v1746, %v1530
          %v1860 = vsel %vm1858, %v1747, %v1531
          %v1861 = vsel %vm1858, %v1748, %v1532
          %v1862 = vsel %vm1858, %v1749, %v1533
          %v1863 = vsel %vm1858, %v1750, %v1534
          %v1864 = vsel %vm1858, %v1751, %v1535
          %v1865 = vsel %vm1858, %v1752, %v1536
          %v1866 = vsel %vm1858, %v1753, %v1537
          %v1867 = vsel %vm1858, %v1770, %v1578
          %v1868 = vsel %vm1858, %v1771, %v1579
          %v1869 = vsel %vm1858, %v1772, %v1580
          %v1870 = vsel %vm1858, %v1773, %v1581
          %v1871 = vsel %vm1858, %v1774, %v1582
          %v1872 = vsel %vm1858, %v1775, %v1583
          %v1873 = vsel %vm1858, %v1776, %v1584
          %v1874 = vsel %vm1858, %v1777, %v1585
          %v1875 = vsel %vm1858, %v1794, %v1658
          %v1876 = vsel %vm1858, %v1795, %v1659
          %v1877 = vsel %vm1858, %v1796, %v1660
          %v1878 = vsel %vm1858, %v1797, %v1661
          %v1879 = vsel %vm1858, %v1798, %v1662
          %v1880 = vsel %vm1858, %v1799, %v1663
          %v1881 = vsel %vm1858, %v1800, %v1664
          %v1882 = vsel %vm1858, %v1801, %v1665
          %v1883 = vsel %vm1858, %v1818, %v1698
          %v1884 = vsel %vm1858, %v1819, %v1699
          %v1885 = vsel %vm1858, %v1820, %v1700
          %v1886 = vsel %vm1858, %v1821, %v1701
          %v1887 = vsel %vm1858, %v1822, %v1702
          %v1888 = vsel %vm1858, %v1823, %v1703
          %v1889 = vsel %vm1858, %v1824, %v1704
          %v1890 = vsel %vm1858, %v1825, %v1705
          %1891 = vst [vmem:[%s307] sm:$0xff] %v1859
          %1892 = vst [vmem:[%s307 + $0x8] sm:$0xff] %v1860
          %1893 = vst [vmem:[%s307 + $0x10] sm:$0xff] %v1861
          %1894 = vst [vmem:[%s307 + $0x18] sm:$0xff] %v1862
          %1895 = vst [vmem:[%s307 + $0x20] sm:$0xff] %v1863
          %1896 = vst [vmem:[%s307 + $0x28] sm:$0xff] %v1864
          %1897 = vst [vmem:[%s307 + $0x30] sm:$0xff] %v1865
          %1898 = vst [vmem:[%s307 + $0x38] sm:$0xff] %v1866
          %1899 = vst [vmem:[%s307 + $0x40] sm:$0xff] %v1867
          %1900 = vst [vmem:[%s307 + $0x48] sm:$0xff] %v1868
          %1901 = vst [vmem:[%s307 + $0x50] sm:$0xff] %v1869
          %1902 = vst [vmem:[%s307 + $0x58] sm:$0xff] %v1870
          %1903 = vst [vmem:[%s307 + $0x60] sm:$0xff] %v1871
          %1904 = vst [vmem:[%s307 + $0x68] sm:$0xff] %v1872
          %1905 = vst [vmem:[%s307 + $0x70] sm:$0xff] %v1873
          %1906 = vst [vmem:[%s307 + $0x78] sm:$0xff] %v1874
          %1907 = vst [vmem:[%s307 + $0x80] sm:$0xff] %v1875
          %1908 = vst [vmem:[%s307 + $0x88] sm:$0xff] %v1876
          %1909 = vst [vmem:[%s307 + $0x90] sm:$0xff] %v1877
          %1910 = vst [vmem:[%s307 + $0x98] sm:$0xff] %v1878
          %1911 = vst [vmem:[%s307 + $0xa0] sm:$0xff] %v1879
          %1912 = vst [vmem:[%s307 + $0xa8] sm:$0xff] %v1880
          %1913 = vst [vmem:[%s307 + $0xb0] sm:$0xff] %v1881
          %1914 = vst [vmem:[%s307 + $0xb8] sm:$0xff] %v1882
          %1915 = vst [vmem:[%s307 + $0xc0] sm:$0xff] %v1883
          %1916 = vst [vmem:[%s307 + $0xc8] sm:$0xff] %v1884
          %1917 = vst [vmem:[%s307 + $0xd0] sm:$0xff] %v1885
          %1918 = vst [vmem:[%s307 + $0xd8] sm:$0xff] %v1886
          %1919 = vst [vmem:[%s307 + $0xe0] sm:$0xff] %v1887
          %1920 = vst [vmem:[%s307 + $0xe8] sm:$0xff] %v1888
          %1921 = vst [vmem:[%s307 + $0xf0] sm:$0xff] %v1889
          %1922 = vst [vmem:[%s307 + $0xf8] sm:$0xff] %v1890
          %1923 = vst [vmem:[%s307 + $0x100] sm:$0xf] %v1842
          %1924 = vst [vmem:[%s307 + $0x108] sm:$0xf] %v1843
          %1925 = vst [vmem:[%s307 + $0x110] sm:$0xf] %v1844
          %1926 = vst [vmem:[%s307 + $0x118] sm:$0xf] %v1845
          %1927 = vst [vmem:[%s307 + $0x120] sm:$0xf] %v1846
          %1928 = vst [vmem:[%s307 + $0x128] sm:$0xf] %v1847
          %1929 = vst [vmem:[%s307 + $0x130] sm:$0xf] %v1848
          %1930 = vst [vmem:[%s307 + $0x138] sm:$0xf] %v1849
        $region44: #{grasp_proposal_forward.1} parent=39 // pred_fallthru
          _
        %s1931 = sand.u32 %s152, 1
        %s1932 = sand.u32 %s152, 1
        %s1933 = smul.addr %s1932, 256
        %s1934 = scalar_lea.vmem [#allocation2], %s1933
        %p1935 = scmp.lt.s32.totalorder %s23, 0
        %s1936 = scalar_select %p1935, %s23, 0
        %s1937 = smul.u32 8, %s1936
        %p1938 = scmp.lt.s32.totalorder %s22, 1
        %s1939 = scalar_select %p1938, %s22, 1
        %p1940 = scmp.lt.s32.totalorder %s1937, 7
        %s1941 = scalar_select %p1940, %s1937, 7
        %s1942 = smul.addr %s1939, 40
        %s1943 = sadd.s32 %s1941, %s1942
        %s1944 = smul.addr %s1943, 8
        %s1945 = scalar_lea.vmem %s6, %s1944
        // Predicated region
        $region45: #{grasp_proposal_forward.1} parent=39 // pred_check
          %p1946 = pneg %p162
        $region46: #{grasp_proposal_forward.1} parent=39 // pred_check_branch
          %1948 = sbr.rel (%p1946) target = $region48
        $region47: #{grasp_proposal_forward.1} parent=39 // pred_region
          %s1949 = smul.u32 8, %s23
          %s1950 = smul.addr %s22, 64
          %s1951 = sadd.s32 %s1949, %s1950
          %s1952 = smul.addr %s1951, 8
          %s1953 = scalar_lea.vmem %s5, %s1952
          // Predicated region
          $region49: #{grasp_proposal_forward.1} parent=47 // pred_check
            _
          $region50: #{grasp_proposal_forward.1} parent=47 // pred_check_branch
            %1955 = sbr.rel (0) target = $region52
          $region51: #{grasp_proposal_forward.1} parent=47 // pred_region
            // Predicated region
            $region53: #{grasp_proposal_forward.1} parent=51 // pred_check
              _
            $region54: #{grasp_proposal_forward.1} parent=51 // pred_check_branch
              %1957 = sbr.rel (0) target = $region56
            $region55: #{grasp_proposal_forward.1} parent=51 // pred_region
              loop: start=0, step=1, limit=1
              $region57: #{grasp_proposal_forward.1} parent=55 // loop_pre_header
                _
              $region58: #{grasp_proposal_forward.1} parent=55 // loop_header
                %s1959 = sphi 0, %s1963
                %p1960 = scmp.ge.s32.totalorder %s1959, 1
                %s1964 = sphi %s1934, %s1934
                %s1965 = sphi %s1953, %s1953
              $region59: #{grasp_proposal_forward.1} parent=55 // loop_header_branch
                %1962 = sbr.rel (%p1960) target = $region63
              $region60: #{grasp_proposal_forward.1} parent=55 // loop_body
                %v1966 = vld [vmem:[%s1964] sm:$0xff]
                %1967 = vst [vmem:[%s1965] sm:$0xff] %v1966
                %v1968 = vld [vmem:[%s1964 + $0x8] sm:$0xff]
                %1969 = vst [vmem:[%s1965 + $0x8] sm:$0xff] %v1968
                %v1970 = vld [vmem:[%s1964 + $0x10] sm:$0xff]
                %1971 = vst [vmem:[%s1965 + $0x10] sm:$0xff] %v1970
                %v1972 = vld [vmem:[%s1964 + $0x18] sm:$0xff]
                %1973 = vst [vmem:[%s1965 + $0x18] sm:$0xff] %v1972
                %v1974 = vld [vmem:[%s1964 + $0x20] sm:$0xff]
                %1975 = vst [vmem:[%s1965 + $0x20] sm:$0xff] %v1974
                %v1976 = vld [vmem:[%s1964 + $0x28] sm:$0xff]
                %1977 = vst [vmem:[%s1965 + $0x28] sm:$0xff] %v1976
                %v1978 = vld [vmem:[%s1964 + $0x30] sm:$0xff]
                %1979 = vst [vmem:[%s1965 + $0x30] sm:$0xff] %v1978
                %v1980 = vld [vmem:[%s1964 + $0x38] sm:$0xff]
                %1981 = vst [vmem:[%s1965 + $0x38] sm:$0xff] %v1980
                %v1982 = vld [vmem:[%s1964 + $0x40] sm:$0xff]
                %1983 = vst [vmem:[%s1965 + $0x80] sm:$0xff] %v1982
                %v1984 = vld [vmem:[%s1964 + $0x48] sm:$0xff]
                %1985 = vst [vmem:[%s1965 + $0x88] sm:$0xff] %v1984
                %v1986 = vld [vmem:[%s1964 + $0x50] sm:$0xff]
                %1987 = vst [vmem:[%s1965 + $0x90] sm:$0xff] %v1986
                %v1988 = vld [vmem:[%s1964 + $0x58] sm:$0xff]
                %1989 = vst [vmem:[%s1965 + $0x98] sm:$0xff] %v1988
                %v1990 = vld [vmem:[%s1964 + $0x60] sm:$0xff]
                %1991 = vst [vmem:[%s1965 + $0xa0] sm:$0xff] %v1990
                %v1992 = vld [vmem:[%s1964 + $0x68] sm:$0xff]
                %1993 = vst [vmem:[%s1965 + $0xa8] sm:$0xff] %v1992
                %v1994 = vld [vmem:[%s1964 + $0x70] sm:$0xff]
                %1995 = vst [vmem:[%s1965 + $0xb0] sm:$0xff] %v1994
                %v1996 = vld [vmem:[%s1964 + $0x78] sm:$0xff]
                %1997 = vst [vmem:[%s1965 + $0xb8] sm:$0xff] %v1996
                %v1998 = vld [vmem:[%s1964 + $0x80] sm:$0xff]
                %1999 = vst [vmem:[%s1965 + $0x100] sm:$0xff] %v1998
                %v2000 = vld [vmem:[%s1964 + $0x88] sm:$0xff]
                %2001 = vst [vmem:[%s1965 + $0x108] sm:$0xff] %v2000
                %v2002 = vld [vmem:[%s1964 + $0x90] sm:$0xff]
                %2003 = vst [vmem:[%s1965 + $0x110] sm:$0xff] %v2002
                %v2004 = vld [vmem:[%s1964 + $0x98] sm:$0xff]
                %2005 = vst [vmem:[%s1965 + $0x118] sm:$0xff] %v2004
                %v2006 = vld [vmem:[%s1964 + $0xa0] sm:$0xff]
                %2007 = vst [vmem:[%s1965 + $0x120] sm:$0xff] %v2006
                %v2008 = vld [vmem:[%s1964 + $0xa8] sm:$0xff]
                %2009 = vst [vmem:[%s1965 + $0x128] sm:$0xff] %v2008
                %v2010 = vld [vmem:[%s1964 + $0xb0] sm:$0xff]
                %2011 = vst [vmem:[%s1965 + $0x130] sm:$0xff] %v2010
                %v2012 = vld [vmem:[%s1964 + $0xb8] sm:$0xff]
                %2013 = vst [vmem:[%s1965 + $0x138] sm:$0xff] %v2012
                %v2014 = vld [vmem:[%s1964 + $0xc0] sm:$0xff]
                %2015 = vst [vmem:[%s1965 + $0x180] sm:$0xff] %v2014
                %v2016 = vld [vmem:[%s1964 + $0xc8] sm:$0xff]
                %2017 = vst [vmem:[%s1965 + $0x188] sm:$0xff] %v2016
                %v2018 = vld [vmem:[%s1964 + $0xd0] sm:$0xff]
                %2019 = vst [vmem:[%s1965 + $0x190] sm:$0xff] %v2018
                %v2020 = vld [vmem:[%s1964 + $0xd8] sm:$0xff]
                %2021 = vst [vmem:[%s1965 + $0x198] sm:$0xff] %v2020
                %v2022 = vld [vmem:[%s1964 + $0xe0] sm:$0xff]
                %2023 = vst [vmem:[%s1965 + $0x1a0] sm:$0xff] %v2022
                %v2024 = vld [vmem:[%s1964 + $0xe8] sm:$0xff]
                %2025 = vst [vmem:[%s1965 + $0x1a8] sm:$0xff] %v2024
                %v2026 = vld [vmem:[%s1964 + $0xf0] sm:$0xff]
                %2027 = vst [vmem:[%s1965 + $0x1b0] sm:$0xff] %v2026
                %v2028 = vld [vmem:[%s1964 + $0xf8] sm:$0xff]
                %2029 = vst [vmem:[%s1965 + $0x1b8] sm:$0xff] %v2028
              $region61: #{grasp_proposal_forward.1} parent=55 // loop_footer
                %s1963 = sadd.s32 1, %s1959
              $region62: #{grasp_proposal_forward.1} parent=55 // loop_footer_branch
                %1958 = sbr.rel target = $region58
              $region63: #{grasp_proposal_forward.1} parent=55 // loop_exit
                _
            $region56: #{grasp_proposal_forward.1} parent=51 // pred_fallthru
              _
            // Predicated region
            $region64: #{grasp_proposal_forward.1} parent=51 // pred_check
              _
            $region65: #{grasp_proposal_forward.1} parent=51 // pred_check_branch
              %2031 = sbr.rel target = $region67
            $region66: #{grasp_proposal_forward.1} parent=51 // pred_region
              _
            $region67: #{grasp_proposal_forward.1} parent=51 // pred_fallthru
              _
          $region52: #{grasp_proposal_forward.1} parent=47 // pred_fallthru
            _
          %2032 = vnop
        $region48: #{grasp_proposal_forward.1} parent=39 // pred_fallthru
          _
        // Predicated region
        $region68: #{grasp_proposal_forward.1} parent=39 // pred_check
          %p2033 = pneg %p194
        $region69: #{grasp_proposal_forward.1} parent=39 // pred_check_branch
          %2035 = sbr.rel (%p2033) target = $region71
        $region70: #{grasp_proposal_forward.1} parent=39 // pred_region
          %p2036 = scmp.lt.s32.totalorder %s23, 0
          %s2037 = scalar_select %p2036, %s23, 0
          %s2038 = smul.u32 8, %s2037
        $region71: #{grasp_proposal_forward.1} parent=39 // pred_fallthru
          _
      $region40: #{grasp_proposal_forward.1} parent=5 // pred_fallthru
        _
      %p2039 = scmp.le.s32.totalorder 2, %s13
      // Predicated region
      $region72: #{grasp_proposal_forward.1} parent=5 // pred_check
        %p2040 = pneg %p2039
      $region73: #{grasp_proposal_forward.1} parent=5 // pred_check_branch
        %2042 = sbr.rel (%p2040) target = $region75
      $region74: #{grasp_proposal_forward.1} parent=5 // pred_region
        %s2043 = ssub.s32 %s13, 2
        // Predicated region
        $region76: #{grasp_proposal_forward.1} parent=74 // pred_check
          %p2044 = pneg %p168
        $region77: #{grasp_proposal_forward.1} parent=74 // pred_check_branch
          %2046 = sbr.rel (%p2044) target = $region79
        $region78: #{grasp_proposal_forward.1} parent=74 // pred_region
          %s2047 = sand.u32 %s153, 1
          %s2048 = sand.u32 %s153, 1
          %s2049 = smul.addr %s2048, 256
          %s2050 = scalar_lea.vmem [#allocation2], %s2049
        $region79: #{grasp_proposal_forward.1} parent=74 // pred_fallthru
          _
        // Predicated region
        $region80: #{grasp_proposal_forward.1} parent=74 // pred_check
          %p2051 = pneg %p200
        $region81: #{grasp_proposal_forward.1} parent=74 // pred_check_branch
          %2053 = sbr.rel (%p2051) target = $region83
        $region82: #{grasp_proposal_forward.1} parent=74 // pred_region
          %p2054 = scmp.lt.s32.totalorder %s25, 0
          %s2055 = scalar_select %p2054, %s25, 0
          %s2056 = smul.u32 8, %s2055
          %p2057 = scmp.lt.s32.totalorder %s24, 1
          %s2058 = scalar_select %p2057, %s24, 1
          %p2059 = scmp.lt.s32.totalorder %s2056, 7
          %s2060 = scalar_select %p2059, %s2056, 7
          %s2061 = smul.addr %s2058, 40
          %s2062 = sadd.s32 %s2060, %s2061
          %s2063 = smul.addr %s2062, 8
          %s2064 = scalar_lea.vmem %s6, %s2063
        $region83: #{grasp_proposal_forward.1} parent=74 // pred_fallthru
          _
      $region75: #{grasp_proposal_forward.1} parent=5 // pred_fallthru
        _
    $region6: #{grasp_proposal_forward.1} parent=1 // loop_footer
      %s17 = sadd.s32 1, %s13
    $region7: #{grasp_proposal_forward.1} parent=1 // loop_footer_branch
      %12 = sbr.rel target = $region3
    $region8: #{grasp_proposal_forward.1} parent=1 // loop_exit
      _

</llo_original>
